<compile_context>
chip_gen: v7x
topology: tpu7x:2x2x1
jax: 0.10.0
libtpu: 0.0.40
codegen_flags: <defaults>
</compile_context>

<pallas_src>
import jax
import jax.numpy as jnp
from jax.experimental import pallas as pl
from jax.experimental.pallas import tpu as pltpu

HIDDEN = 32
NUM_HEADS = 2
HEAD_DIM = HIDDEN // NUM_HEADS
FFN_DIM = 2048          # nn.TransformerEncoderLayer default dim_feedforward
LN_EPS = 1e-5


def transformer_nn_kernel(x_ref,
                          w_xk_ref, b_xk_ref, w_xv_ref, b_xv_ref,
                          w_emb_ref, b_emb_ref, w_xq_ref, b_xq_ref,
                          sel_ref, w_o_ref, b_o_ref,
                          g1_ref, beta1_ref,
                          w1_ref, b1_ref, w2_ref, b2_ref,
                          g2_ref, beta2_ref,
                          w_out_ref, b_out_ref,
                          out_ref):
    x = x_ref[...]                                    # (Bt, S, Din) f32
    Bt, S, Din = x.shape
    H = HIDDEN

    x2d = x.reshape(Bt * S, Din)

    # --- K / V for every position; embedding Linear folded into the weights ---
    k = (jnp.dot(x2d, w_xk_ref[...], preferred_element_type=jnp.float32)
         + b_xk_ref[...]).reshape(Bt, S, H)
    v = (jnp.dot(x2d, w_xv_ref[...], preferred_element_type=jnp.float32)
         + b_xv_ref[...]).reshape(Bt, S, H)

    # --- last position only: residual input + (pre-scaled) query -------------
    x_last = x[:, S - 1, :]                           # (Bt, Din)
    h_last = jnp.dot(x_last, w_emb_ref[...],
                     preferred_element_type=jnp.float32) + b_emb_ref[...]
    q = jnp.dot(x_last, w_xq_ref[...],                # scale + bias folded in
                preferred_element_type=jnp.float32) + b_xq_ref[...]

    # --- multi-head attention for the single query position ------------------
    # Block-diagonal selector broadcasts each head's score across its 16-lane
    # chunk in one MXU pass; softmax and the V reduction stay 32 lanes wide.
    prod = q[:, None, :] * k                          # (Bt, S, H)
    s = jnp.dot(prod.reshape(Bt * S, H), sel_ref[...],
                preferred_element_type=jnp.float32).reshape(Bt, S, H)
    m = jnp.max(s, axis=1, keepdims=True)             # softmax over sequence
    e = jnp.exp(s - m)
    p = e * pl.reciprocal(jnp.sum(e, axis=1, keepdims=True), approx=True)
    attn = jnp.sum(p * v, axis=1)                     # (Bt, H)
    attn = jnp.dot(attn, w_o_ref[...],
                   preferred_element_type=jnp.float32) + b_o_ref[...]

    # --- residual + LayerNorm1 (post-norm) ------------------------------------
    x1 = h_last + attn
    mu1 = jnp.mean(x1, axis=-1, keepdims=True)
    var1 = jnp.mean((x1 - mu1) ** 2, axis=-1, keepdims=True)
    x1 = (x1 - mu1) * jax.lax.rsqrt(var1 + LN_EPS) * g1_ref[...] + beta1_ref[...]

    # --- feed-forward: bf16 operands on the MXU, f32 accumulation / ReLU ------
    ff = jnp.dot(x1.astype(jnp.bfloat16), w1_ref[...],
                 preferred_element_type=jnp.float32) + b1_ref[...]   # (Bt, FFN)
    ff = jnp.maximum(ff, 0.0)
    ff = jnp.dot(ff.astype(jnp.bfloat16), w2_ref[...],
                 preferred_element_type=jnp.float32) + b2_ref[...]   # (Bt, H)

    # --- residual + LayerNorm2 -------------------------------------------------
    x2 = x1 + ff
    mu2 = jnp.mean(x2, axis=-1, keepdims=True)
    var2 = jnp.mean((x2 - mu2) ** 2, axis=-1, keepdims=True)
    x2 = (x2 - mu2) * jax.lax.rsqrt(var2 + LN_EPS) * g2_ref[...] + beta2_ref[...]

    # --- output head (Q-values) ------------------------------------------------
    out_ref[...] = jnp.dot(x2, w_out_ref[...],
                           preferred_element_type=jnp.float32) + b_out_ref[...]


def transformer_nn_forward(x, params, *, block_b=None):
    B, S, Din = x.shape
    H = HIDDEN
    A = params['w_out'].shape[0]

    # ---- batch tile selection -------------------------------------------------
    # >=256-row tiles fill the 256-wide MXU (v6e/v7x) and amortize the ~0.35us
    # per-grid-step overhead; for large batches keep >=2 grid steps so the
    # "parallel" axis can be split across v7x's two TensorCores.
    if block_b is None:
        block_b = B if B < 512 else min(512, max(256, B // 2))
    num_blocks = pl.cdiv(B, block_b)
    B_pad = num_blocks * block_b
    if B_pad != B:
        x = jnp.pad(x, ((0, B_pad - B), (0, 0), (0, 0)))   # tail tile zero-padded

    # ---- wrapper-side algebraic folding (one-time XLA work) --------------------
    scale = 1.0 / float(HEAD_DIM) ** 0.5
    w_emb_t = params['w_emb'].T                         # (Din, H)
    b_emb = params['b_emb']                             # (1, H)
    wq = params['w_qkv'][:H, :]
    wk = params['w_qkv'][H:2 * H, :]
    wv = params['w_qkv'][2 * H:, :]
    bq = params['b_qkv'][:, :H]
    bk = params['b_qkv'][:, H:2 * H]
    bv = params['b_qkv'][:, 2 * H:]
    # embedding folded into K / V / Q; softmax scale + bias folded into Q
    w_xk = w_emb_t @ wk.T                               # (Din, H)
    b_xk = b_emb @ wk.T + bk                            # (1, H)
    w_xv = w_emb_t @ wv.T
    b_xv = b_emb @ wv.T + bv
    w_xq = (w_emb_t @ wq.T) * scale
    b_xq = (b_emb @ wq.T + bq) * scale
    w_o_t = params['w_o'].T                             # (H, H)
    # bf16 weights for the MXU-heavy FFN matmuls (half the DMA / VMEM)
    w1_t = params['w1'].T.astype(jnp.bfloat16)          # (H, FFN)
    w2_t = params['w2'].T.astype(jnp.bfloat16)          # (FFN, H)
    w_out_t = params['w_out'].T                         # (H, A)
    # block-diagonal head selector: sel[i, j] = 1 iff lanes i and j share a head
    head_of = jnp.arange(H) // HEAD_DIM
    sel = (head_of[:, None] == head_of[None, :]).astype(jnp.float32)   # (H, H)

    consts = (w_xk, b_xk, w_xv, b_xv, w_emb_t, b_emb, w_xq, b_xq,
              sel, w_o_t, params['b_o'],
              params['g1'], params['beta1'],
              w1_t, params['b1'], w2_t, params['b2'],
              params['g2'], params['beta2'],
              w_out_t, params['b_out'])

    def const_spec(a):
        zeros = (0,) * a.ndim                 # weights pinned / VMEM-resident
        return pl.BlockSpec(a.shape, lambda i, z=zeros: z)

    in_specs = [pl.BlockSpec((block_b, S, Din), lambda i: (i, 0, 0))]
    in_specs += [const_spec(a) for a in consts]

    weight_bytes = sum(int(a.size) * a.dtype.itemsize for a in consts)
    cost = pl.CostEstimate(
        flops=int(2 * B_pad * (S * Din * 2 * H        # K, V projections
                               + 2 * Din * H          # q + h_last
                               + S * H * (H + 2)      # score mul + selector + p*V
                               + H * H                # out projection
                               + 2 * H * FFN_DIM      # FFN
                               + H * A)),             # output head
        transcendentals=int(B_pad * S * H),           # softmax exp
        bytes_accessed=int(x.size * 4 + weight_bytes + B_pad * A * 4),
    )

    out = pl.pallas_call(
        transformer_nn_kernel,
        out_shape=jax.ShapeDtypeStruct((B_pad, A), jnp.float32),
        grid=(num_blocks,),
        in_specs=in_specs,
        out_specs=pl.BlockSpec((block_b, A), lambda i: (i, 0)),
        compiler_params=pltpu.CompilerParams(
            dimension_semantics=("parallel",),        # batch over v7x's 2 TCs
            vmem_limit_bytes=32 * 1024 * 1024),       # headroom vs v5e's 16 MiB default
        cost_estimate=cost,
    )(x, *consts)
    return out[:B] if B_pad != B else out


def init_params(key, state_dim, action_n, hidden=HIDDEN, ffn=FFN_DIM):
    """Deterministic synthetic weights matching the PyTorch parameter shapes.

    Biases / LayerNorm params are stored as (1, N) so every kernel ref is 2-D.
    """
    ks = jax.random.split(key, 16)

    def w(k, out_d, in_d, scale=0.05):
        return (scale * jax.random.normal(k, (out_d, in_d))).astype(jnp.float32)

    def b(k, n, scale=0.02):
        return (scale * jax.random.normal(k, (1, n))).astype(jnp.float32)

    return {
        # nn.Linear(state_dim, hidden)
        'w_emb': w(ks[0], hidden, state_dim), 'b_emb': b(ks[1], hidden),
        # nn.MultiheadAttention in_proj (3H, H) + bias, out_proj (H, H) + bias
        'w_qkv': w(ks[2], 3 * hidden, hidden), 'b_qkv': b(ks[3], 3 * hidden),
        'w_o': w(ks[4], hidden, hidden), 'b_o': b(ks[5], hidden),
        # LayerNorm1
        'g1': jnp.ones((1, hidden), jnp.float32),
        'beta1': jnp.zeros((1, hidden), jnp.float32),
        # FFN: Linear(hidden, 2048), Linear(2048, hidden)
        'w1': w(ks[6], ffn, hidden), 'b1': b(ks[7], ffn),
        'w2': w(ks[8], hidden, ffn), 'b2': b(ks[9], hidden),
        # LayerNorm2
        'g2': jnp.ones((1, hidden), jnp.float32),
        'beta2': jnp.zeros((1, hidden), jnp.float32),
        # output head nn.Linear(hidden, action_n)
        'w_out': w(ks[10], action_n, hidden), 'b_out': b(ks[11], action_n),
    }


def _reference_forward(x, params):
    """Pure-JAX reference mirroring the PyTorch module (full-sequence path)."""
    H = HIDDEN
    B, S, _ = x.shape
    h = jnp.einsum('bsd,hd->bsh', x, params['w_emb']) + params['b_emb']
    wq, wk, wv = (params['w_qkv'][:H], params['w_qkv'][H:2 * H],
                  params['w_qkv'][2 * H:])
    bq, bk, bv = (params['b_qkv'][:, :H], params['b_qkv'][:, H:2 * H],
                  params['b_qkv'][:, 2 * H:])
    q = jnp.einsum('bsh,oh->bso', h, wq) + bq
    k = jnp.einsum('bsh,oh->bso', h, wk) + bk
    v = jnp.einsum('bsh,oh->bso', h, wv) + bv
    qh = q.reshape(B, S, NUM_HEADS, HEAD_DIM)
    kh = k.reshape(B, S, NUM_HEADS, HEAD_DIM)
    vh = v.reshape(B, S, NUM_HEADS, HEAD_DIM)
    s = jnp.einsum('bqnd,bknd->bnqk', qh, kh) / (HEAD_DIM ** 0.5)
    p = jax.nn.softmax(s, axis=-1)
    o = jnp.einsum('bnqk,bknd->bqnd', p, vh).reshape(B, S, H)
    o = jnp.einsum('bso,ho->bsh', o, params['w_o']) + params['b_o']

    def ln(z, g, bt):
        mu = jnp.mean(z, axis=-1, keepdims=True)
        var = jnp.mean((z - mu) ** 2, axis=-1, keepdims=True)
        return (z - mu) * jax.lax.rsqrt(var + LN_EPS) * g + bt

    x1 = ln(h + o, params['g1'], params['beta1'])
    ff = jnp.maximum(jnp.einsum('bsh,fh->bsf', x1, params['w1']) + params['b1'], 0.0)
    ff = jnp.einsum('bsf,hf->bsh', ff, params['w2']) + params['b2']
    x2 = ln(x1 + ff, params['g2'], params['beta2'])
    last = x2[:, -1, :]
    return jnp.einsum('bh,ah->ba', last, params['w_out']) + params['b_out']


if __name__ == "__main__":
    key = jax.random.PRNGKey(0)
    kx, kp = jax.random.split(key)

    B, S, state_dim, action_n = 2, 8, 4, 3
    x = jax.random.normal(kx, (B, S, state_dim), dtype=jnp.float32)
    params = init_params(kp, state_dim, action_n)

    qvalues = transformer_nn_forward(x, params)
    qvalues = jax.block_until_ready(qvalues)

    assert qvalues.shape == (B, action_n)
    assert qvalues.dtype == jnp.float32
    assert bool(jnp.all(jnp.isfinite(qvalues)))

    # Validate the optimized kernel against the full-sequence f32 reference
    # (tolerance covers bf16 FFN operands, approx softmax reciprocal and the
    # wrapper-side weight folding's FP-associativity change).
    ref = _reference_forward(x, params)
    max_err = float(jnp.max(jnp.abs(qvalues - ref)))
    assert max_err < 2e-2, f"mismatch vs reference: {max_err}"

    print("KERNEL_OK")
</pallas_src>

<mosaic_0001>
module attributes {stable_mosaic.version = 11 : i64} {
  func.func @transformer_nn_kernel(%arg0: i32, %arg1: memref<2x8x4xf32, #tpu.memory_space<vmem>>, %arg2: memref<4x32xf32, #tpu.memory_space<vmem>>, %arg3: memref<1x32xf32, #tpu.memory_space<vmem>>, %arg4: memref<4x32xf32, #tpu.memory_space<vmem>>, %arg5: memref<1x32xf32, #tpu.memory_space<vmem>>, %arg6: memref<4x32xf32, #tpu.memory_space<vmem>>, %arg7: memref<1x32xf32, #tpu.memory_space<vmem>>, %arg8: memref<4x32xf32, #tpu.memory_space<vmem>>, %arg9: memref<1x32xf32, #tpu.memory_space<vmem>>, %arg10: memref<32x32xf32, #tpu.memory_space<vmem>>, %arg11: memref<32x32xf32, #tpu.memory_space<vmem>>, %arg12: memref<1x32xf32, #tpu.memory_space<vmem>>, %arg13: memref<1x32xf32, #tpu.memory_space<vmem>>, %arg14: memref<1x32xf32, #tpu.memory_space<vmem>>, %arg15: memref<32x2048xbf16, #tpu.memory_space<vmem>>, %arg16: memref<1x2048xf32, #tpu.memory_space<vmem>>, %arg17: memref<2048x32xbf16, #tpu.memory_space<vmem>>, %arg18: memref<1x32xf32, #tpu.memory_space<vmem>>, %arg19: memref<1x32xf32, #tpu.memory_space<vmem>>, %arg20: memref<1x32xf32, #tpu.memory_space<vmem>>, %arg21: memref<32x3xf32, #tpu.memory_space<vmem>>, %arg22: memref<1x3xf32, #tpu.memory_space<vmem>>, %arg23: memref<2x3xf32, #tpu.memory_space<vmem>>) attributes {dimension_semantics = [#tpu.dimension_semantics<parallel>], iteration_bounds = array<i64: 1>, scalar_prefetch = 0 : i64, scratch_operands = 0 : i64, tpu.core_type = #tpu.core_type<tc>, window_params = [{transform_indices = @transform_0, window_bounds = array<i64: 2, 8, 4>}, {pipeline_mode = #tpu.pipeline_mode<synchronous>, transform_indices = @transform_1, window_bounds = array<i64: 4, 32>}, {pipeline_mode = #tpu.pipeline_mode<synchronous>, transform_indices = @transform_2, window_bounds = array<i64: 1, 32>}, {pipeline_mode = #tpu.pipeline_mode<synchronous>, transform_indices = @transform_3, window_bounds = array<i64: 4, 32>}, {pipeline_mode = #tpu.pipeline_mode<synchronous>, transform_indices = @transform_4, window_bounds = array<i64: 1, 32>}, {pipeline_mode = #tpu.pipeline_mode<synchronous>, transform_indices = @transform_5, window_bounds = array<i64: 4, 32>}, {pipeline_mode = #tpu.pipeline_mode<synchronous>, transform_indices = @transform_6, window_bounds = array<i64: 1, 32>}, {pipeline_mode = #tpu.pipeline_mode<synchronous>, transform_indices = @transform_7, window_bounds = array<i64: 4, 32>}, {pipeline_mode = #tpu.pipeline_mode<synchronous>, transform_indices = @transform_8, window_bounds = array<i64: 1, 32>}, {pipeline_mode = #tpu.pipeline_mode<synchronous>, transform_indices = @transform_9, window_bounds = array<i64: 32, 32>}, {pipeline_mode = #tpu.pipeline_mode<synchronous>, transform_indices = @transform_10, window_bounds = array<i64: 32, 32>}, {pipeline_mode = #tpu.pipeline_mode<synchronous>, transform_indices = @transform_11, window_bounds = array<i64: 1, 32>}, {pipeline_mode = #tpu.pipeline_mode<synchronous>, transform_indices = @transform_12, window_bounds = array<i64: 1, 32>}, {pipeline_mode = #tpu.pipeline_mode<synchronous>, transform_indices = @transform_13, window_bounds = array<i64: 1, 32>}, {pipeline_mode = #tpu.pipeline_mode<synchronous>, transform_indices = @transform_14, window_bounds = array<i64: 32, 2048>}, {pipeline_mode = #tpu.pipeline_mode<synchronous>, transform_indices = @transform_15, window_bounds = array<i64: 1, 2048>}, {pipeline_mode = #tpu.pipeline_mode<synchronous>, transform_indices = @transform_16, window_bounds = array<i64: 2048, 32>}, {pipeline_mode = #tpu.pipeline_mode<synchronous>, transform_indices = @transform_17, window_bounds = array<i64: 1, 32>}, {pipeline_mode = #tpu.pipeline_mode<synchronous>, transform_indices = @transform_18, window_bounds = array<i64: 1, 32>}, {pipeline_mode = #tpu.pipeline_mode<synchronous>, transform_indices = @transform_19, window_bounds = array<i64: 1, 32>}, {pipeline_mode = #tpu.pipeline_mode<synchronous>, transform_indices = @transform_20, window_bounds = array<i64: 32, 3>}, {pipeline_mode = #tpu.pipeline_mode<synchronous>, transform_indices = @transform_21, window_bounds = array<i64: 1, 3>}, {transform_indices = @transform_22, window_bounds = array<i64: 2, 3>}]} {
    %c0 = arith.constant 0 : index
    %c0_0 = arith.constant 0 : index
    %c0_1 = arith.constant 0 : index
    %0 = vector.load %arg1[%c0, %c0_0, %c0_1] : memref<2x8x4xf32, #tpu.memory_space<vmem>>, vector<2x8x4xf32>
    %1 = vector.shape_cast %0 : vector<2x8x4xf32> to vector<16x4xf32>
    %c0_2 = arith.constant 0 : index
    %c0_3 = arith.constant 0 : index
    %2 = vector.load %arg2[%c0_2, %c0_3] : memref<4x32xf32, #tpu.memory_space<vmem>>, vector<4x32xf32>
    %cst = arith.constant dense<0.000000e+00> : vector<16x32xf32>
    %3 = tpu.matmul %1, %2, %cst {dimension_numbers = #tpu.dot_dimension_numbers<[1], [0], [0], [1], [0, 0, 1, 1], [], []>} : vector<16x4xf32>, vector<4x32xf32>, vector<16x32xf32> -> vector<16x32xf32>
    %c0_4 = arith.constant 0 : index
    %c0_5 = arith.constant 0 : index
    %4 = vector.load %arg3[%c0_4, %c0_5] : memref<1x32xf32, #tpu.memory_space<vmem>>, vector<1x32xf32>
    %5 = vector.broadcast %4 : vector<1x32xf32> to vector<16x32xf32>
    %6 = arith.addf %3, %5 : vector<16x32xf32>
    %7 = vector.shape_cast %6 : vector<16x32xf32> to vector<2x8x32xf32>
    %c0_6 = arith.constant 0 : index
    %c0_7 = arith.constant 0 : index
    %8 = vector.load %arg4[%c0_6, %c0_7] : memref<4x32xf32, #tpu.memory_space<vmem>>, vector<4x32xf32>
    %cst_8 = arith.constant dense<0.000000e+00> : vector<16x32xf32>
    %9 = tpu.matmul %1, %8, %cst_8 {dimension_numbers = #tpu.dot_dimension_numbers<[1], [0], [0], [1], [0, 0, 1, 1], [], []>} : vector<16x4xf32>, vector<4x32xf32>, vector<16x32xf32> -> vector<16x32xf32>
    %c0_9 = arith.constant 0 : index
    %c0_10 = arith.constant 0 : index
    %10 = vector.load %arg5[%c0_9, %c0_10] : memref<1x32xf32, #tpu.memory_space<vmem>>, vector<1x32xf32>
    %11 = vector.broadcast %10 : vector<1x32xf32> to vector<16x32xf32>
    %12 = arith.addf %9, %11 : vector<16x32xf32>
    %13 = vector.shape_cast %12 : vector<16x32xf32> to vector<2x8x32xf32>
    %14 = vector.extract_strided_slice %0 {offsets = [0, 7, 0], sizes = [2, 1, 4], strides = [1, 1, 1]} : vector<2x8x4xf32> to vector<2x1x4xf32>
    %15 = vector.shape_cast %14 : vector<2x1x4xf32> to vector<2x4xf32>
    %c0_11 = arith.constant 0 : index
    %c0_12 = arith.constant 0 : index
    %16 = vector.load %arg6[%c0_11, %c0_12] : memref<4x32xf32, #tpu.memory_space<vmem>>, vector<4x32xf32>
    %cst_13 = arith.constant dense<0.000000e+00> : vector<2x32xf32>
    %17 = tpu.matmul %15, %16, %cst_13 {dimension_numbers = #tpu.dot_dimension_numbers<[1], [0], [0], [1], [0, 0, 1, 1], [], []>} : vector<2x4xf32>, vector<4x32xf32>, vector<2x32xf32> -> vector<2x32xf32>
    %c0_14 = arith.constant 0 : index
    %c0_15 = arith.constant 0 : index
    %18 = vector.load %arg7[%c0_14, %c0_15] : memref<1x32xf32, #tpu.memory_space<vmem>>, vector<1x32xf32>
    %19 = vector.broadcast %18 : vector<1x32xf32> to vector<2x32xf32>
    %20 = arith.addf %17, %19 : vector<2x32xf32>
    %c0_16 = arith.constant 0 : index
    %c0_17 = arith.constant 0 : index
    %21 = vector.load %arg8[%c0_16, %c0_17] : memref<4x32xf32, #tpu.memory_space<vmem>>, vector<4x32xf32>
    %cst_18 = arith.constant dense<0.000000e+00> : vector<2x32xf32>
    %22 = tpu.matmul %15, %21, %cst_18 {dimension_numbers = #tpu.dot_dimension_numbers<[1], [0], [0], [1], [0, 0, 1, 1], [], []>} : vector<2x4xf32>, vector<4x32xf32>, vector<2x32xf32> -> vector<2x32xf32>
    %c0_19 = arith.constant 0 : index
    %c0_20 = arith.constant 0 : index
    %23 = vector.load %arg9[%c0_19, %c0_20] : memref<1x32xf32, #tpu.memory_space<vmem>>, vector<1x32xf32>
    %24 = vector.broadcast %23 : vector<1x32xf32> to vector<2x32xf32>
    %25 = arith.addf %22, %24 : vector<2x32xf32>
    %26 = vector.shape_cast %25 : vector<2x32xf32> to vector<2x1x32xf32>
    %27 = vector.broadcast %26 : vector<2x1x32xf32> to vector<2x8x32xf32>
    %28 = arith.mulf %27, %7 : vector<2x8x32xf32>
    %29 = vector.shape_cast %28 : vector<2x8x32xf32> to vector<16x32xf32>
    %c0_21 = arith.constant 0 : index
    %c0_22 = arith.constant 0 : index
    %30 = vector.load %arg10[%c0_21, %c0_22] : memref<32x32xf32, #tpu.memory_space<vmem>>, vector<32x32xf32>
    %cst_23 = arith.constant dense<0.000000e+00> : vector<16x32xf32>
    %31 = tpu.matmul %29, %30, %cst_23 {dimension_numbers = #tpu.dot_dimension_numbers<[1], [0], [0], [1], [0, 0, 1, 1], [], []>} : vector<16x32xf32>, vector<32x32xf32>, vector<16x32xf32> -> vector<16x32xf32>
    %32 = vector.shape_cast %31 : vector<16x32xf32> to vector<2x8x32xf32>
    %cst_24 = arith.constant dense<0xFF800000> : vector<2x32xf32>
    %33 = vector.multi_reduction <maximumf>, %32, %cst_24 [1] : vector<2x8x32xf32> to vector<2x32xf32>
    %34 = vector.shape_cast %33 : vector<2x32xf32> to vector<2x1x32xf32>
    %35 = vector.broadcast %34 : vector<2x1x32xf32> to vector<2x8x32xf32>
    %36 = arith.subf %32, %35 : vector<2x8x32xf32>
    %37 = math.exp %36 : vector<2x8x32xf32>
    %cst_25 = arith.constant dense<0.000000e+00> : vector<2x32xf32>
    %38 = vector.multi_reduction <add>, %37, %cst_25 [1] : vector<2x8x32xf32> to vector<2x32xf32>
    %39 = vector.shape_cast %38 : vector<2x32xf32> to vector<2x1x32xf32>
    %40 = tpu.reciprocal %39 {approx = true} : vector<2x1x32xf32> -> vector<2x1x32xf32>
    %41 = vector.broadcast %40 : vector<2x1x32xf32> to vector<2x8x32xf32>
    %42 = arith.mulf %37, %41 : vector<2x8x32xf32>
    %43 = arith.mulf %42, %13 : vector<2x8x32xf32>
    %cst_26 = arith.constant dense<0.000000e+00> : vector<2x32xf32>
    %44 = vector.multi_reduction <add>, %43, %cst_26 [1] : vector<2x8x32xf32> to vector<2x32xf32>
    %c0_27 = arith.constant 0 : index
    %c0_28 = arith.constant 0 : index
    %45 = vector.load %arg11[%c0_27, %c0_28] : memref<32x32xf32, #tpu.memory_space<vmem>>, vector<32x32xf32>
    %cst_29 = arith.constant dense<0.000000e+00> : vector<2x32xf32>
    %46 = tpu.matmul %44, %45, %cst_29 {dimension_numbers = #tpu.dot_dimension_numbers<[1], [0], [0], [1], [0, 0, 1, 1], [], []>} : vector<2x32xf32>, vector<32x32xf32>, vector<2x32xf32> -> vector<2x32xf32>
    %c0_30 = arith.constant 0 : index
    %c0_31 = arith.constant 0 : index
    %47 = vector.load %arg12[%c0_30, %c0_31] : memref<1x32xf32, #tpu.memory_space<vmem>>, vector<1x32xf32>
    %48 = vector.broadcast %47 : vector<1x32xf32> to vector<2x32xf32>
    %49 = arith.addf %46, %48 : vector<2x32xf32>
    %50 = arith.addf %20, %49 : vector<2x32xf32>
    %cst_32 = arith.constant dense<0.000000e+00> : vector<2xf32>
    %51 = vector.multi_reduction <add>, %50, %cst_32 [1] : vector<2x32xf32> to vector<2xf32>
    %52 = vector.shape_cast %51 : vector<2xf32> to vector<2x1xf32>
    %cst_33 = arith.constant 3.200000e+01 : f32
    %53 = vector.broadcast %cst_33 : f32 to vector<2x1xf32>
    %54 = arith.divf %52, %53 : vector<2x1xf32>
    %55 = vector.broadcast %54 : vector<2x1xf32> to vector<2x32xf32>
    %56 = arith.subf %50, %55 : vector<2x32xf32>
    %57 = arith.mulf %56, %56 : vector<2x32xf32>
    %cst_34 = arith.constant dense<0.000000e+00> : vector<2xf32>
    %58 = vector.multi_reduction <add>, %57, %cst_34 [1] : vector<2x32xf32> to vector<2xf32>
    %59 = vector.shape_cast %58 : vector<2xf32> to vector<2x1xf32>
    %cst_35 = arith.constant 3.200000e+01 : f32
    %60 = vector.broadcast %cst_35 : f32 to vector<2x1xf32>
    %61 = arith.divf %59, %60 : vector<2x1xf32>
    %62 = vector.broadcast %54 : vector<2x1xf32> to vector<2x32xf32>
    %63 = arith.subf %50, %62 : vector<2x32xf32>
    %cst_36 = arith.constant 9.99999974E-6 : f32
    %64 = vector.broadcast %cst_36 : f32 to vector<2x1xf32>
    %65 = arith.addf %61, %64 : vector<2x1xf32>
    %66 = math.rsqrt %65 : vector<2x1xf32>
    %67 = vector.broadcast %66 : vector<2x1xf32> to vector<2x32xf32>
    %68 = arith.mulf %63, %67 : vector<2x32xf32>
    %c0_37 = arith.constant 0 : index
    %c0_38 = arith.constant 0 : index
    %69 = vector.load %arg13[%c0_37, %c0_38] : memref<1x32xf32, #tpu.memory_space<vmem>>, vector<1x32xf32>
    %70 = vector.broadcast %69 : vector<1x32xf32> to vector<2x32xf32>
    %71 = arith.mulf %68, %70 : vector<2x32xf32>
    %c0_39 = arith.constant 0 : index
    %c0_40 = arith.constant 0 : index
    %72 = vector.load %arg14[%c0_39, %c0_40] : memref<1x32xf32, #tpu.memory_space<vmem>>, vector<1x32xf32>
    %73 = vector.broadcast %72 : vector<1x32xf32> to vector<2x32xf32>
    %74 = arith.addf %71, %73 : vector<2x32xf32>
    %75 = arith.truncf %74 : vector<2x32xf32> to vector<2x32xbf16>
    %c0_41 = arith.constant 0 : index
    %c0_42 = arith.constant 0 : index
    %76 = vector.load %arg15[%c0_41, %c0_42] : memref<32x2048xbf16, #tpu.memory_space<vmem>>, vector<32x2048xbf16>
    %cst_43 = arith.constant dense<0.000000e+00> : vector<2x2048xf32>
    %77 = tpu.matmul %75, %76, %cst_43 {dimension_numbers = #tpu.dot_dimension_numbers<[1], [0], [0], [1], [0, 0, 1, 1], [], []>} : vector<2x32xbf16>, vector<32x2048xbf16>, vector<2x2048xf32> -> vector<2x2048xf32>
    %c0_44 = arith.constant 0 : index
    %c0_45 = arith.constant 0 : index
    %78 = vector.load %arg16[%c0_44, %c0_45] : memref<1x2048xf32, #tpu.memory_space<vmem>>, vector<1x2048xf32>
    %79 = vector.broadcast %78 : vector<1x2048xf32> to vector<2x2048xf32>
    %80 = arith.addf %77, %79 : vector<2x2048xf32>
    %cst_46 = arith.constant 0.000000e+00 : f32
    %81 = vector.broadcast %cst_46 : f32 to vector<2x2048xf32>
    %82 = arith.maximumf %80, %81 : vector<2x2048xf32>
    %83 = arith.truncf %82 : vector<2x2048xf32> to vector<2x2048xbf16>
    %c0_47 = arith.constant 0 : index
    %c0_48 = arith.constant 0 : index
    %84 = vector.load %arg17[%c0_47, %c0_48] : memref<2048x32xbf16, #tpu.memory_space<vmem>>, vector<2048x32xbf16>
    %cst_49 = arith.constant dense<0.000000e+00> : vector<2x32xf32>
    %85 = tpu.matmul %83, %84, %cst_49 {dimension_numbers = #tpu.dot_dimension_numbers<[1], [0], [0], [1], [0, 0, 1, 1], [], []>} : vector<2x2048xbf16>, vector<2048x32xbf16>, vector<2x32xf32> -> vector<2x32xf32>
    %c0_50 = arith.constant 0 : index
    %c0_51 = arith.constant 0 : index
    %86 = vector.load %arg18[%c0_50, %c0_51] : memref<1x32xf32, #tpu.memory_space<vmem>>, vector<1x32xf32>
    %87 = vector.broadcast %86 : vector<1x32xf32> to vector<2x32xf32>
    %88 = arith.addf %85, %87 : vector<2x32xf32>
    %89 = arith.addf %74, %88 : vector<2x32xf32>
    %cst_52 = arith.constant dense<0.000000e+00> : vector<2xf32>
    %90 = vector.multi_reduction <add>, %89, %cst_52 [1] : vector<2x32xf32> to vector<2xf32>
    %91 = vector.shape_cast %90 : vector<2xf32> to vector<2x1xf32>
    %cst_53 = arith.constant 3.200000e+01 : f32
    %92 = vector.broadcast %cst_53 : f32 to vector<2x1xf32>
    %93 = arith.divf %91, %92 : vector<2x1xf32>
    %94 = vector.broadcast %93 : vector<2x1xf32> to vector<2x32xf32>
    %95 = arith.subf %89, %94 : vector<2x32xf32>
    %96 = arith.mulf %95, %95 : vector<2x32xf32>
    %cst_54 = arith.constant dense<0.000000e+00> : vector<2xf32>
    %97 = vector.multi_reduction <add>, %96, %cst_54 [1] : vector<2x32xf32> to vector<2xf32>
    %98 = vector.shape_cast %97 : vector<2xf32> to vector<2x1xf32>
    %cst_55 = arith.constant 3.200000e+01 : f32
    %99 = vector.broadcast %cst_55 : f32 to vector<2x1xf32>
    %100 = arith.divf %98, %99 : vector<2x1xf32>
    %101 = vector.broadcast %93 : vector<2x1xf32> to vector<2x32xf32>
    %102 = arith.subf %89, %101 : vector<2x32xf32>
    %cst_56 = arith.constant 9.99999974E-6 : f32
    %103 = vector.broadcast %cst_56 : f32 to vector<2x1xf32>
    %104 = arith.addf %100, %103 : vector<2x1xf32>
    %105 = math.rsqrt %104 : vector<2x1xf32>
    %106 = vector.broadcast %105 : vector<2x1xf32> to vector<2x32xf32>
    %107 = arith.mulf %102, %106 : vector<2x32xf32>
    %c0_57 = arith.constant 0 : index
    %c0_58 = arith.constant 0 : index
    %108 = vector.load %arg19[%c0_57, %c0_58] : memref<1x32xf32, #tpu.memory_space<vmem>>, vector<1x32xf32>
    %109 = vector.broadcast %108 : vector<1x32xf32> to vector<2x32xf32>
    %110 = arith.mulf %107, %109 : vector<2x32xf32>
    %c0_59 = arith.constant 0 : index
    %c0_60 = arith.constant 0 : index
    %111 = vector.load %arg20[%c0_59, %c0_60] : memref<1x32xf32, #tpu.memory_space<vmem>>, vector<1x32xf32>
    %112 = vector.broadcast %111 : vector<1x32xf32> to vector<2x32xf32>
    %113 = arith.addf %110, %112 : vector<2x32xf32>
    %c0_61 = arith.constant 0 : index
    %c0_62 = arith.constant 0 : index
    %114 = vector.load %arg21[%c0_61, %c0_62] : memref<32x3xf32, #tpu.memory_space<vmem>>, vector<32x3xf32>
    %cst_63 = arith.constant dense<0.000000e+00> : vector<2x3xf32>
    %115 = tpu.matmul %113, %114, %cst_63 {dimension_numbers = #tpu.dot_dimension_numbers<[1], [0], [0], [1], [0, 0, 1, 1], [], []>} : vector<2x32xf32>, vector<32x3xf32>, vector<2x3xf32> -> vector<2x3xf32>
    %c0_64 = arith.constant 0 : index
    %c0_65 = arith.constant 0 : index
    %116 = vector.load %arg22[%c0_64, %c0_65] : memref<1x3xf32, #tpu.memory_space<vmem>>, vector<1x3xf32>
    %117 = vector.broadcast %116 : vector<1x3xf32> to vector<2x3xf32>
    %118 = arith.addf %115, %117 : vector<2x3xf32>
    %c0_66 = arith.constant 0 : index
    %c0_67 = arith.constant 0 : index
    %119 = vector.load %arg23[%c0_66, %c0_67] : memref<2x3xf32, #tpu.memory_space<vmem>>, vector<2x3xf32>
    tpu.vector_store %arg23[%c0_66, %c0_67], %118 {strides = array<i32>} : memref<2x3xf32, #tpu.memory_space<vmem>>, vector<2x3xf32>,
    return
  }
  func.func @transform_0(%arg0: i32) -> (i32, i32, i32) {
    %c0_i32 = arith.constant 0 : i32
    %c0_i32_0 = arith.constant 0 : i32
    %c0_i32_1 = arith.constant 0 : i32
    return %arg0, %c0_i32, %c0_i32_0 : i32, i32, i32
  }
  func.func @transform_1(%arg0: i32) -> (i32, i32) {
    %c0_i32 = arith.constant 0 : i32
    %c0_i32_0 = arith.constant 0 : i32
    %c0_i32_1 = arith.constant 0 : i32
    return %c0_i32, %c0_i32_0 : i32, i32
  }
  func.func @transform_2(%arg0: i32) -> (i32, i32) {
    %c0_i32 = arith.constant 0 : i32
    %c0_i32_0 = arith.constant 0 : i32
    %c0_i32_1 = arith.constant 0 : i32
    return %c0_i32, %c0_i32_0 : i32, i32
  }
  func.func @transform_3(%arg0: i32) -> (i32, i32) {
    %c0_i32 = arith.constant 0 : i32
    %c0_i32_0 = arith.constant 0 : i32
    %c0_i32_1 = arith.constant 0 : i32
    return %c0_i32, %c0_i32_0 : i32, i32
  }
  func.func @transform_4(%arg0: i32) -> (i32, i32) {
    %c0_i32 = arith.constant 0 : i32
    %c0_i32_0 = arith.constant 0 : i32
    %c0_i32_1 = arith.constant 0 : i32
    return %c0_i32, %c0_i32_0 : i32, i32
  }
  func.func @transform_5(%arg0: i32) -> (i32, i32) {
    %c0_i32 = arith.constant 0 : i32
    %c0_i32_0 = arith.constant 0 : i32
    %c0_i32_1 = arith.constant 0 : i32
    return %c0_i32, %c0_i32_0 : i32, i32
  }
  func.func @transform_6(%arg0: i32) -> (i32, i32) {
    %c0_i32 = arith.constant 0 : i32
    %c0_i32_0 = arith.constant 0 : i32
    %c0_i32_1 = arith.constant 0 : i32
    return %c0_i32, %c0_i32_0 : i32, i32
  }
  func.func @transform_7(%arg0: i32) -> (i32, i32) {
    %c0_i32 = arith.constant 0 : i32
    %c0_i32_0 = arith.constant 0 : i32
    %c0_i32_1 = arith.constant 0 : i32
    return %c0_i32, %c0_i32_0 : i32, i32
  }
  func.func @transform_8(%arg0: i32) -> (i32, i32) {
    %c0_i32 = arith.constant 0 : i32
    %c0_i32_0 = arith.constant 0 : i32
    %c0_i32_1 = arith.constant 0 : i32
    return %c0_i32, %c0_i32_0 : i32, i32
  }
  func.func @transform_9(%arg0: i32) -> (i32, i32) {
    %c0_i32 = arith.constant 0 : i32
    %c0_i32_0 = arith.constant 0 : i32
    %c0_i32_1 = arith.constant 0 : i32
    return %c0_i32, %c0_i32_0 : i32, i32
  }
  func.func @transform_10(%arg0: i32) -> (i32, i32) {
    %c0_i32 = arith.constant 0 : i32
    %c0_i32_0 = arith.constant 0 : i32
    %c0_i32_1 = arith.constant 0 : i32
    return %c0_i32, %c0_i32_0 : i32, i32
  }
  func.func @transform_11(%arg0: i32) -> (i32, i32) {
    %c0_i32 = arith.constant 0 : i32
    %c0_i32_0 = arith.constant 0 : i32
    %c0_i32_1 = arith.constant 0 : i32
    return %c0_i32, %c0_i32_0 : i32, i32
  }
  func.func @transform_12(%arg0: i32) -> (i32, i32) {
    %c0_i32 = arith.constant 0 : i32
    %c0_i32_0 = arith.constant 0 : i32
    %c0_i32_1 = arith.constant 0 : i32
    return %c0_i32, %c0_i32_0 : i32, i32
  }
  func.func @transform_13(%arg0: i32) -> (i32, i32) {
    %c0_i32 = arith.constant 0 : i32
    %c0_i32_0 = arith.constant 0 : i32
    %c0_i32_1 = arith.constant 0 : i32
    return %c0_i32, %c0_i32_0 : i32, i32
  }
  func.func @transform_14(%arg0: i32) -> (i32, i32) {
    %c0_i32 = arith.constant 0 : i32
    %c0_i32_0 = arith.constant 0 : i32
    %c0_i32_1 = arith.constant 0 : i32
    return %c0_i32, %c0_i32_0 : i32, i32
  }
  func.func @transform_15(%arg0: i32) -> (i32, i32) {
    %c0_i32 = arith.constant 0 : i32
    %c0_i32_0 = arith.constant 0 : i32
    %c0_i32_1 = arith.constant 0 : i32
    return %c0_i32, %c0_i32_0 : i32, i32
  }
  func.func @transform_16(%arg0: i32) -> (i32, i32) {
    %c0_i32 = arith.constant 0 : i32
    %c0_i32_0 = arith.constant 0 : i32
    %c0_i32_1 = arith.constant 0 : i32
    return %c0_i32, %c0_i32_0 : i32, i32
  }
  func.func @transform_17(%arg0: i32) -> (i32, i32) {
    %c0_i32 = arith.constant 0 : i32
    %c0_i32_0 = arith.constant 0 : i32
    %c0_i32_1 = arith.constant 0 : i32
    return %c0_i32, %c0_i32_0 : i32, i32
  }
  func.func @transform_18(%arg0: i32) -> (i32, i32) {
    %c0_i32 = arith.constant 0 : i32
    %c0_i32_0 = arith.constant 0 : i32
    %c0_i32_1 = arith.constant 0 : i32
    return %c0_i32, %c0_i32_0 : i32, i32
  }
  func.func @transform_19(%arg0: i32) -> (i32, i32) {
    %c0_i32 = arith.constant 0 : i32
    %c0_i32_0 = arith.constant 0 : i32
    %c0_i32_1 = arith.constant 0 : i32
    return %c0_i32, %c0_i32_0 : i32, i32
  }
  func.func @transform_20(%arg0: i32) -> (i32, i32) {
    %c0_i32 = arith.constant 0 : i32
    %c0_i32_0 = arith.constant 0 : i32
    %c0_i32_1 = arith.constant 0 : i32
    return %c0_i32, %c0_i32_0 : i32, i32
  }
  func.func @transform_21(%arg0: i32) -> (i32, i32) {
    %c0_i32 = arith.constant 0 : i32
    %c0_i32_0 = arith.constant 0 : i32
    %c0_i32_1 = arith.constant 0 : i32
    return %c0_i32, %c0_i32_0 : i32, i32
  }
  func.func @transform_22(%arg0: i32) -> (i32, i32) {
    %c0_i32 = arith.constant 0 : i32
    %c0_i32_0 = arith.constant 0 : i32
    return %arg0, %c0_i32 : i32, i32
  }
}

</mosaic_0001>

<llo_original>
// kernel: tpu_custom_call.1
$region0: #{tpu_custom_call.1}
  #allocation0 [shape = 'u32[]', space=smem, size = 0x4, offset = 0x4, fixed_abs, tag = 'smem constant byte address 0x4 - core index']
  #allocation1 [shape = 'u32[144,128]{1,0:T(1,128)}', space=vmem, size = 0x12000, scoped, tag = 'internal scratch']
  %s0 = inlined_call_operand.vmem [shape: f32[2,8,4], index: 0, kind: input, shape index: {}]
  %s1 = inlined_call_operand.vmem [shape: f32[4,32], index: 1, kind: input, shape index: {}]
  %s2 = inlined_call_operand.vmem [shape: f32[1,32], index: 2, kind: input, shape index: {}]
  %s3 = inlined_call_operand.vmem [shape: f32[4,32], index: 3, kind: input, shape index: {}]
  %s4 = inlined_call_operand.vmem [shape: f32[1,32], index: 4, kind: input, shape index: {}]
  %s5 = inlined_call_operand.vmem [shape: f32[4,32], index: 5, kind: input, shape index: {}]
  %s6 = inlined_call_operand.vmem [shape: f32[1,32], index: 6, kind: input, shape index: {}]
  %s7 = inlined_call_operand.vmem [shape: f32[4,32], index: 7, kind: input, shape index: {}]
  %s8 = inlined_call_operand.vmem [shape: f32[1,32], index: 8, kind: input, shape index: {}]
  %s9 = inlined_call_operand.vmem [shape: f32[32,32], index: 9, kind: input, shape index: {}]
  %s10 = inlined_call_operand.vmem [shape: f32[32,32], index: 10, kind: input, shape index: {}]
  %s11 = inlined_call_operand.vmem [shape: f32[1,32], index: 11, kind: input, shape index: {}]
  %s12 = inlined_call_operand.vmem [shape: f32[1,32], index: 12, kind: input, shape index: {}]
  %s13 = inlined_call_operand.vmem [shape: f32[1,32], index: 13, kind: input, shape index: {}]
  %s14 = inlined_call_operand.vmem [shape: bf16[32,2048], index: 14, kind: input, shape index: {}]
  %s15 = inlined_call_operand.vmem [shape: f32[1,2048], index: 15, kind: input, shape index: {}]
  %s16 = inlined_call_operand.vmem [shape: bf16[2048,32], index: 16, kind: input, shape index: {}]
  %s17 = inlined_call_operand.vmem [shape: f32[1,32], index: 17, kind: input, shape index: {}]
  %s18 = inlined_call_operand.vmem [shape: f32[1,32], index: 18, kind: input, shape index: {}]
  %s19 = inlined_call_operand.vmem [shape: f32[1,32], index: 19, kind: input, shape index: {}]
  %s20 = inlined_call_operand.vmem [shape: f32[32,3], index: 20, kind: input, shape index: {}]
  %s21 = inlined_call_operand.vmem [shape: f32[1,3], index: 21, kind: input, shape index: {}]
  %s22 = inlined_call_operand.hbm [shape: f32[2,3], index: 22, kind: output, shape index: {}]
  %s23 = sld [smem:[#allocation0]]
  $region98: #{tpu_custom_call.1} parent=0
    _
  %s25 = ssub.s32 1, %s23
  %s26 = scalar_select 0, %s25, %s23
  $region1: #{tpu_custom_call.1} parent=0
    #allocation2 [shape = 'u8[1024]{0}', space=vmem, size = 0x400, scoped, tag = 'output window, operand 0, single buffered']
    #allocation3 [shape = 's32[1]{0}', space=sflag, size = 0x4, scoped, tag = 'scoped memory for tpu_custom_call.1']
    %27 = vsyncpa [#allocation3], 0
    // Predicated region
    $region2: #{tpu_custom_call.1} parent=1 // pred_check
      _
    $region3: #{tpu_custom_call.1} parent=1 // pred_check_branch
      %29 = sbr.rel (0) target = $region5
    $region4: #{tpu_custom_call.1} parent=1 // pred_region
      _
    $region5: #{tpu_custom_call.1} parent=1 // pred_fallthru
      _
    // Predicated region
    $region6: #{tpu_custom_call.1} parent=1 // pred_check
      _
    $region7: #{tpu_custom_call.1} parent=1 // pred_check_branch
      %31 = sbr.rel (0) target = $region9
    $region8: #{tpu_custom_call.1} parent=1 // pred_region
      _
    $region9: #{tpu_custom_call.1} parent=1 // pred_fallthru
      _
    // Predicated region
    $region10: #{tpu_custom_call.1} parent=1 // pred_check
      _
    $region11: #{tpu_custom_call.1} parent=1 // pred_check_branch
      %33 = sbr.rel (0) target = $region13
    $region12: #{tpu_custom_call.1} parent=1 // pred_region
      _
    $region13: #{tpu_custom_call.1} parent=1 // pred_fallthru
      _
    // Predicated region
    $region14: #{tpu_custom_call.1} parent=1 // pred_check
      _
    $region15: #{tpu_custom_call.1} parent=1 // pred_check_branch
      %35 = sbr.rel (0) target = $region17
    $region16: #{tpu_custom_call.1} parent=1 // pred_region
      _
    $region17: #{tpu_custom_call.1} parent=1 // pred_fallthru
      _
    // Predicated region
    $region18: #{tpu_custom_call.1} parent=1 // pred_check
      _
    $region19: #{tpu_custom_call.1} parent=1 // pred_check_branch
      %37 = sbr.rel (0) target = $region21
    $region20: #{tpu_custom_call.1} parent=1 // pred_region
      _
    $region21: #{tpu_custom_call.1} parent=1 // pred_fallthru
      _
    // Predicated region
    $region22: #{tpu_custom_call.1} parent=1 // pred_check
      _
    $region23: #{tpu_custom_call.1} parent=1 // pred_check_branch
      %39 = sbr.rel (0) target = $region25
    $region24: #{tpu_custom_call.1} parent=1 // pred_region
      _
    $region25: #{tpu_custom_call.1} parent=1 // pred_fallthru
      _
    // Predicated region
    $region26: #{tpu_custom_call.1} parent=1 // pred_check
      _
    $region27: #{tpu_custom_call.1} parent=1 // pred_check_branch
      %41 = sbr.rel (0) target = $region29
    $region28: #{tpu_custom_call.1} parent=1 // pred_region
      _
    $region29: #{tpu_custom_call.1} parent=1 // pred_fallthru
      _
    // Predicated region
    $region30: #{tpu_custom_call.1} parent=1 // pred_check
      _
    $region31: #{tpu_custom_call.1} parent=1 // pred_check_branch
      %43 = sbr.rel (0) target = $region33
    $region32: #{tpu_custom_call.1} parent=1 // pred_region
      _
    $region33: #{tpu_custom_call.1} parent=1 // pred_fallthru
      _
    // Predicated region
    $region34: #{tpu_custom_call.1} parent=1 // pred_check
      _
    $region35: #{tpu_custom_call.1} parent=1 // pred_check_branch
      %45 = sbr.rel (0) target = $region37
    $region36: #{tpu_custom_call.1} parent=1 // pred_region
      _
    $region37: #{tpu_custom_call.1} parent=1 // pred_fallthru
      _
    // Predicated region
    $region38: #{tpu_custom_call.1} parent=1 // pred_check
      _
    $region39: #{tpu_custom_call.1} parent=1 // pred_check_branch
      %47 = sbr.rel (0) target = $region41
    $region40: #{tpu_custom_call.1} parent=1 // pred_region
      _
    $region41: #{tpu_custom_call.1} parent=1 // pred_fallthru
      _
    // Predicated region
    $region42: #{tpu_custom_call.1} parent=1 // pred_check
      _
    $region43: #{tpu_custom_call.1} parent=1 // pred_check_branch
      %49 = sbr.rel (0) target = $region45
    $region44: #{tpu_custom_call.1} parent=1 // pred_region
      _
    $region45: #{tpu_custom_call.1} parent=1 // pred_fallthru
      _
    // Predicated region
    $region46: #{tpu_custom_call.1} parent=1 // pred_check
      _
    $region47: #{tpu_custom_call.1} parent=1 // pred_check_branch
      %51 = sbr.rel (0) target = $region49
    $region48: #{tpu_custom_call.1} parent=1 // pred_region
      _
    $region49: #{tpu_custom_call.1} parent=1 // pred_fallthru
      _
    // Predicated region
    $region50: #{tpu_custom_call.1} parent=1 // pred_check
      _
    $region51: #{tpu_custom_call.1} parent=1 // pred_check_branch
      %53 = sbr.rel (0) target = $region53
    $region52: #{tpu_custom_call.1} parent=1 // pred_region
      _
    $region53: #{tpu_custom_call.1} parent=1 // pred_fallthru
      _
    // Predicated region
    $region54: #{tpu_custom_call.1} parent=1 // pred_check
      _
    $region55: #{tpu_custom_call.1} parent=1 // pred_check_branch
      %55 = sbr.rel (0) target = $region57
    $region56: #{tpu_custom_call.1} parent=1 // pred_region
      _
    $region57: #{tpu_custom_call.1} parent=1 // pred_fallthru
      _
    // Predicated region
    $region58: #{tpu_custom_call.1} parent=1 // pred_check
      _
    $region59: #{tpu_custom_call.1} parent=1 // pred_check_branch
      %57 = sbr.rel (0) target = $region61
    $region60: #{tpu_custom_call.1} parent=1 // pred_region
      _
    $region61: #{tpu_custom_call.1} parent=1 // pred_fallthru
      _
    // Predicated region
    $region62: #{tpu_custom_call.1} parent=1 // pred_check
      _
    $region63: #{tpu_custom_call.1} parent=1 // pred_check_branch
      %59 = sbr.rel (0) target = $region65
    $region64: #{tpu_custom_call.1} parent=1 // pred_region
      _
    $region65: #{tpu_custom_call.1} parent=1 // pred_fallthru
      _
    // Predicated region
    $region66: #{tpu_custom_call.1} parent=1 // pred_check
      _
    $region67: #{tpu_custom_call.1} parent=1 // pred_check_branch
      %61 = sbr.rel (0) target = $region69
    $region68: #{tpu_custom_call.1} parent=1 // pred_region
      _
    $region69: #{tpu_custom_call.1} parent=1 // pred_fallthru
      _
    // Predicated region
    $region70: #{tpu_custom_call.1} parent=1 // pred_check
      _
    $region71: #{tpu_custom_call.1} parent=1 // pred_check_branch
      %63 = sbr.rel (0) target = $region73
    $region72: #{tpu_custom_call.1} parent=1 // pred_region
      _
    $region73: #{tpu_custom_call.1} parent=1 // pred_fallthru
      _
    // Predicated region
    $region74: #{tpu_custom_call.1} parent=1 // pred_check
      _
    $region75: #{tpu_custom_call.1} parent=1 // pred_check_branch
      %65 = sbr.rel (0) target = $region77
    $region76: #{tpu_custom_call.1} parent=1 // pred_region
      _
    $region77: #{tpu_custom_call.1} parent=1 // pred_fallthru
      _
    // Predicated region
    $region78: #{tpu_custom_call.1} parent=1 // pred_check
      _
    $region79: #{tpu_custom_call.1} parent=1 // pred_check_branch
      %67 = sbr.rel (0) target = $region81
    $region80: #{tpu_custom_call.1} parent=1 // pred_region
      _
    $region81: #{tpu_custom_call.1} parent=1 // pred_fallthru
      _
    // Predicated region
    $region82: #{tpu_custom_call.1} parent=1 // pred_check
      _
    $region83: #{tpu_custom_call.1} parent=1 // pred_check_branch
      %69 = sbr.rel (0) target = $region85
    $region84: #{tpu_custom_call.1} parent=1 // pred_region
      _
    $region85: #{tpu_custom_call.1} parent=1 // pred_fallthru
      _
    // Predicated region
    $region86: #{tpu_custom_call.1} parent=1 // pred_check
      _
    $region87: #{tpu_custom_call.1} parent=1 // pred_check_branch
      %71 = sbr.rel (0) target = $region89
    $region88: #{tpu_custom_call.1} parent=1 // pred_region
      _
    $region89: #{tpu_custom_call.1} parent=1 // pred_fallthru
      _
    %v73 = vld [vmem:[%s0] sm:$0xff]
    %v74 = vld [vmem:[%s0 + $0x8] sm:$0xff]
    %v75 = vld [vmem:[%s1] sm:$0xf]
    %v76 = vld [vmem:[%s2] sm:$0x1]
    %v78 = vlaneseq
    %v79 = vshrl.u32 %v78, 7
    %v80 = vsub.s32 0, %v79
    %v81 = vrot.slane %v76, %v80
    %vm83 = vcmask 31744
    %v85 = vsel %vm83, %v73, 0
    %v88 = vsel %vm83, %v74, 0
    %vm90 = vcmask 1043456
    %v92 = vsel %vm90, %v75, 0
    %94 = vmatprep.subr.mxu0 0.0
    %95 = vmatpush1.msra.mxu0 %v92
    %96 = vmatprep.subr.mxu0 0.0
    %97 = vmatpush1.msra.mxu0 0.0
    %98 = vmatprep.subr.mxu0 0.0
    %99 = vmatpush1.msra.mxu0 0.0
    %100 = vmatprep.subr.mxu0 0.0
    %101 = vmatpush1.msra.mxu0 0.0
    %102 = vmatprep.subr.mxu0 0.0
    %103 = vmatpush1.msra.mxu0 0.0
    %104 = vmatprep.subr.mxu0 0.0
    %105 = vmatpush1.msra.mxu0 0.0
    %106 = vmatprep.subr.mxu0 0.0
    %107 = vmatpush1.msra.mxu0 0.0
    %108 = vmatprep.subr.mxu0 0.0
    %109 = vmatpush1.msra.mxu0 0.0
    %110 = vmatprep.subr.mxu0 0.0
    %111 = vmatpush1.msra.mxu0 0.0
    %112 = vmatprep.subr.mxu0 0.0
    %113 = vmatpush1.msra.mxu0 0.0
    %114 = vmatprep.subr.mxu0 0.0
    %115 = vmatpush1.msra.mxu0 0.0
    %116 = vmatprep.subr.mxu0 0.0
    %117 = vmatpush1.msra.mxu0 0.0
    %118 = vmatprep.subr.mxu0 0.0
    %119 = vmatpush1.msra.mxu0 0.0
    %120 = vmatprep.subr.mxu0 0.0
    %121 = vmatpush1.msra.mxu0 0.0
    %122 = vmatprep.subr.mxu0 0.0
    %123 = vmatpush1.msra.mxu0 0.0
    %124 = vmatprep.subr.mxu0 0.0
    %125 = vmatpush1.msra.mxu0 0.0
    %126 = vmatprep.subr.mxu0 0.0
    %127 = vmatpush1.msra.mxu0 0.0
    %128 = vmatprep.subr.mxu0 0.0
    %129 = vmatpush1.msra.mxu0 0.0
    %130 = vmatprep.subr.mxu0 0.0
    %131 = vmatpush1.msra.mxu0 0.0
    %132 = vmatprep.subr.mxu0 0.0
    %133 = vmatpush1.msra.mxu0 0.0
    %134 = vmatprep.subr.mxu0 0.0
    %135 = vmatpush1.msra.mxu0 0.0
    %136 = vmatprep.subr.mxu0 0.0
    %137 = vmatpush1.msra.mxu0 0.0
    %138 = vmatprep.subr.mxu0 0.0
    %139 = vmatpush1.msra.mxu0 0.0
    %140 = vmatprep.subr.mxu0 0.0
    %141 = vmatpush1.msra.mxu0 0.0
    %142 = vmatprep.subr.mxu0 0.0
    %143 = vmatpush1.msra.mxu0 0.0
    %144 = vmatprep.subr.mxu0 0.0
    %145 = vmatpush1.msra.mxu0 0.0
    %146 = vmatprep.subr.mxu0 0.0
    %147 = vmatpush1.msra.mxu0 0.0
    %148 = vmatprep.subr.mxu0 0.0
    %149 = vmatpush1.msra.mxu0 0.0
    %150 = vmatprep.subr.mxu0 0.0
    %151 = vmatpush1.msra.mxu0 0.0
    %152 = vmatprep.subr.mxu0 0.0
    %153 = vmatpush1.msra.mxu0 0.0
    %154 = vmatprep.subr.mxu0 0.0
    %155 = vmatpush1.msra.mxu0 0.0
    %156 = vmatprep.subr.mxu0 0.0
    %157 = vmatpush1.msra.mxu0 0.0
    %158 = vmatprep.mubr.f32.mxu0 0.0
    %159 = vmatmul.mubr.f32.gmra.mrb[0].mxu0 %v85
    %v160 = vpop.f32.mrb[0].mxu0
    %v161 = vadd.f32 %v81, %v160
    %v162 = vpop.f32.mrb[0].mxu0
    %163 = vmatprep.mubr.f32.mxu0 0.0
    %164 = vmatmul.mubr.f32.gmra.mrb[0].mxu0 %v88
    %v165 = vpop.f32.mrb[0].mxu0
    %v166 = vadd.f32 %v81, %v165
    %v167 = vpop.f32.mrb[0].mxu0
    %168 = vdwg.mxu0
    %v169 = vld [vmem:[%s3] sm:$0xf]
    %v170 = vld [vmem:[%s4] sm:$0x1]
    %v172 = vlaneseq
    %v173 = vshrl.u32 %v172, 7
    %v174 = vsub.s32 0, %v173
    %v175 = vrot.slane %v170, %v174
    %v178 = vsel %vm90, %v169, 0
    %180 = vmatprep.subr.mxu0 0.0
    %181 = vmatpush1.msra.mxu0 %v178
    %182 = vmatprep.subr.mxu0 0.0
    %183 = vmatpush1.msra.mxu0 0.0
    %184 = vmatprep.subr.mxu0 0.0
    %185 = vmatpush1.msra.mxu0 0.0
    %186 = vmatprep.subr.mxu0 0.0
    %187 = vmatpush1.msra.mxu0 0.0
    %188 = vmatprep.subr.mxu0 0.0
    %189 = vmatpush1.msra.mxu0 0.0
    %190 = vmatprep.subr.mxu0 0.0
    %191 = vmatpush1.msra.mxu0 0.0
    %192 = vmatprep.subr.mxu0 0.0
    %193 = vmatpush1.msra.mxu0 0.0
    %194 = vmatprep.subr.mxu0 0.0
    %195 = vmatpush1.msra.mxu0 0.0
    %196 = vmatprep.subr.mxu0 0.0
    %197 = vmatpush1.msra.mxu0 0.0
    %198 = vmatprep.subr.mxu0 0.0
    %199 = vmatpush1.msra.mxu0 0.0
    %200 = vmatprep.subr.mxu0 0.0
    %201 = vmatpush1.msra.mxu0 0.0
    %202 = vmatprep.subr.mxu0 0.0
    %203 = vmatpush1.msra.mxu0 0.0
    %204 = vmatprep.subr.mxu0 0.0
    %205 = vmatpush1.msra.mxu0 0.0
    %206 = vmatprep.subr.mxu0 0.0
    %207 = vmatpush1.msra.mxu0 0.0
    %208 = vmatprep.subr.mxu0 0.0
    %209 = vmatpush1.msra.mxu0 0.0
    %210 = vmatprep.subr.mxu0 0.0
    %211 = vmatpush1.msra.mxu0 0.0
    %212 = vmatprep.subr.mxu0 0.0
    %213 = vmatpush1.msra.mxu0 0.0
    %214 = vmatprep.subr.mxu0 0.0
    %215 = vmatpush1.msra.mxu0 0.0
    %216 = vmatprep.subr.mxu0 0.0
    %217 = vmatpush1.msra.mxu0 0.0
    %218 = vmatprep.subr.mxu0 0.0
    %219 = vmatpush1.msra.mxu0 0.0
    %220 = vmatprep.subr.mxu0 0.0
    %221 = vmatpush1.msra.mxu0 0.0
    %222 = vmatprep.subr.mxu0 0.0
    %223 = vmatpush1.msra.mxu0 0.0
    %224 = vmatprep.subr.mxu0 0.0
    %225 = vmatpush1.msra.mxu0 0.0
    %226 = vmatprep.subr.mxu0 0.0
    %227 = vmatpush1.msra.mxu0 0.0
    %228 = vmatprep.subr.mxu0 0.0
    %229 = vmatpush1.msra.mxu0 0.0
    %230 = vmatprep.subr.mxu0 0.0
    %231 = vmatpush1.msra.mxu0 0.0
    %232 = vmatprep.subr.mxu0 0.0
    %233 = vmatpush1.msra.mxu0 0.0
    %234 = vmatprep.subr.mxu0 0.0
    %235 = vmatpush1.msra.mxu0 0.0
    %236 = vmatprep.subr.mxu0 0.0
    %237 = vmatpush1.msra.mxu0 0.0
    %238 = vmatprep.subr.mxu0 0.0
    %239 = vmatpush1.msra.mxu0 0.0
    %240 = vmatprep.subr.mxu0 0.0
    %241 = vmatpush1.msra.mxu0 0.0
    %242 = vmatprep.subr.mxu0 0.0
    %243 = vmatpush1.msra.mxu0 0.0
    %244 = vmatprep.mubr.f32.mxu0 0.0
    %245 = vmatmul.mubr.f32.gmra.mrb[0].mxu0 %v85
    %v246 = vpop.f32.mrb[0].mxu0
    %v247 = vadd.f32 %v175, %v246
    %v248 = vpop.f32.mrb[0].mxu0
    %249 = vmatprep.mubr.f32.mxu0 0.0
    %250 = vmatmul.mubr.f32.gmra.mrb[0].mxu0 %v88
    %v251 = vpop.f32.mrb[0].mxu0
    %v252 = vadd.f32 %v175, %v251
    %v253 = vpop.f32.mrb[0].mxu0
    %254 = vdwg.mxu0
    %v255 = vld [vmem:[%s5] sm:$0xf]
    %v256 = vld [vmem:[%s6] sm:$0x1]
    %v258 = vlaneseq
    %v259 = vshrl.u32 %v258, 7
    %v260 = vsub.s32 0, %v259
    %v261 = vrot.slane %v256, %v260
    %v263 = vrot.slane %v73, 7
    %v264 = vrot.slane %v74, 6
    %vm265 = vcmask 1041409
    %v266 = vsel %vm265, %v264, %v263
    %v267 = vsel %vm83, %v266, 0
    %v270 = vsel %vm90, %v255, 0
    %272 = vmatprep.subr.mxu0 0.0
    %273 = vmatpush1.msra.mxu0 %v270
    %274 = vmatprep.subr.mxu0 0.0
    %275 = vmatpush1.msra.mxu0 0.0
    %276 = vmatprep.subr.mxu0 0.0
    %277 = vmatpush1.msra.mxu0 0.0
    %278 = vmatprep.subr.mxu0 0.0
    %279 = vmatpush1.msra.mxu0 0.0
    %280 = vmatprep.subr.mxu0 0.0
    %281 = vmatpush1.msra.mxu0 0.0
    %282 = vmatprep.subr.mxu0 0.0
    %283 = vmatpush1.msra.mxu0 0.0
    %284 = vmatprep.subr.mxu0 0.0
    %285 = vmatpush1.msra.mxu0 0.0
    %286 = vmatprep.subr.mxu0 0.0
    %287 = vmatpush1.msra.mxu0 0.0
    %288 = vmatprep.subr.mxu0 0.0
    %289 = vmatpush1.msra.mxu0 0.0
    %290 = vmatprep.subr.mxu0 0.0
    %291 = vmatpush1.msra.mxu0 0.0
    %292 = vmatprep.subr.mxu0 0.0
    %293 = vmatpush1.msra.mxu0 0.0
    %294 = vmatprep.subr.mxu0 0.0
    %295 = vmatpush1.msra.mxu0 0.0
    %296 = vmatprep.subr.mxu0 0.0
    %297 = vmatpush1.msra.mxu0 0.0
    %298 = vmatprep.subr.mxu0 0.0
    %299 = vmatpush1.msra.mxu0 0.0
    %300 = vmatprep.subr.mxu0 0.0
    %301 = vmatpush1.msra.mxu0 0.0
    %302 = vmatprep.subr.mxu0 0.0
    %303 = vmatpush1.msra.mxu0 0.0
    %304 = vmatprep.subr.mxu0 0.0
    %305 = vmatpush1.msra.mxu0 0.0
    %306 = vmatprep.subr.mxu0 0.0
    %307 = vmatpush1.msra.mxu0 0.0
    %308 = vmatprep.subr.mxu0 0.0
    %309 = vmatpush1.msra.mxu0 0.0
    %310 = vmatprep.subr.mxu0 0.0
    %311 = vmatpush1.msra.mxu0 0.0
    %312 = vmatprep.subr.mxu0 0.0
    %313 = vmatpush1.msra.mxu0 0.0
    %314 = vmatprep.subr.mxu0 0.0
    %315 = vmatpush1.msra.mxu0 0.0
    %316 = vmatprep.subr.mxu0 0.0
    %317 = vmatpush1.msra.mxu0 0.0
    %318 = vmatprep.subr.mxu0 0.0
    %319 = vmatpush1.msra.mxu0 0.0
    %320 = vmatprep.subr.mxu0 0.0
    %321 = vmatpush1.msra.mxu0 0.0
    %322 = vmatprep.subr.mxu0 0.0
    %323 = vmatpush1.msra.mxu0 0.0
    %324 = vmatprep.subr.mxu0 0.0
    %325 = vmatpush1.msra.mxu0 0.0
    %326 = vmatprep.subr.mxu0 0.0
    %327 = vmatpush1.msra.mxu0 0.0
    %328 = vmatprep.subr.mxu0 0.0
    %329 = vmatpush1.msra.mxu0 0.0
    %330 = vmatprep.subr.mxu0 0.0
    %331 = vmatpush1.msra.mxu0 0.0
    %332 = vmatprep.subr.mxu0 0.0
    %333 = vmatpush1.msra.mxu0 0.0
    %334 = vmatprep.subr.mxu0 0.0
    %335 = vmatpush1.msra.mxu0 0.0
    %336 = vmatprep.mubr.f32.mxu0 0.0
    %337 = vmatmul.mubr.f32.gmra.mrb[0].mxu0 %v267
    %v338 = vpop.f32.mrb[0].mxu0
    %v339 = vadd.f32 %v261, %v338
    %v340 = vpop.f32.mrb[0].mxu0
    %341 = vdwg.mxu0
    %v342 = vld [vmem:[%s7] sm:$0xf]
    %v343 = vld [vmem:[%s8] sm:$0x1]
    %v345 = vlaneseq
    %v346 = vshrl.u32 %v345, 7
    %v347 = vsub.s32 0, %v346
    %v348 = vrot.slane %v343, %v347
    %v351 = vsel %vm90, %v342, 0
    %353 = vmatprep.subr.mxu0 0.0
    %354 = vmatpush1.msra.mxu0 %v351
    %355 = vmatprep.subr.mxu0 0.0
    %356 = vmatpush1.msra.mxu0 0.0
    %357 = vmatprep.subr.mxu0 0.0
    %358 = vmatpush1.msra.mxu0 0.0
    %359 = vmatprep.subr.mxu0 0.0
    %360 = vmatpush1.msra.mxu0 0.0
    %361 = vmatprep.subr.mxu0 0.0
    %362 = vmatpush1.msra.mxu0 0.0
    %363 = vmatprep.subr.mxu0 0.0
    %364 = vmatpush1.msra.mxu0 0.0
    %365 = vmatprep.subr.mxu0 0.0
    %366 = vmatpush1.msra.mxu0 0.0
    %367 = vmatprep.subr.mxu0 0.0
    %368 = vmatpush1.msra.mxu0 0.0
    %369 = vmatprep.subr.mxu0 0.0
    %370 = vmatpush1.msra.mxu0 0.0
    %371 = vmatprep.subr.mxu0 0.0
    %372 = vmatpush1.msra.mxu0 0.0
    %373 = vmatprep.subr.mxu0 0.0
    %374 = vmatpush1.msra.mxu0 0.0
    %375 = vmatprep.subr.mxu0 0.0
    %376 = vmatpush1.msra.mxu0 0.0
    %377 = vmatprep.subr.mxu0 0.0
    %378 = vmatpush1.msra.mxu0 0.0
    %379 = vmatprep.subr.mxu0 0.0
    %380 = vmatpush1.msra.mxu0 0.0
    %381 = vmatprep.subr.mxu0 0.0
    %382 = vmatpush1.msra.mxu0 0.0
    %383 = vmatprep.subr.mxu0 0.0
    %384 = vmatpush1.msra.mxu0 0.0
    %385 = vmatprep.subr.mxu0 0.0
    %386 = vmatpush1.msra.mxu0 0.0
    %387 = vmatprep.subr.mxu0 0.0
    %388 = vmatpush1.msra.mxu0 0.0
    %389 = vmatprep.subr.mxu0 0.0
    %390 = vmatpush1.msra.mxu0 0.0
    %391 = vmatprep.subr.mxu0 0.0
    %392 = vmatpush1.msra.mxu0 0.0
    %393 = vmatprep.subr.mxu0 0.0
    %394 = vmatpush1.msra.mxu0 0.0
    %395 = vmatprep.subr.mxu0 0.0
    %396 = vmatpush1.msra.mxu0 0.0
    %397 = vmatprep.subr.mxu0 0.0
    %398 = vmatpush1.msra.mxu0 0.0
    %399 = vmatprep.subr.mxu0 0.0
    %400 = vmatpush1.msra.mxu0 0.0
    %401 = vmatprep.subr.mxu0 0.0
    %402 = vmatpush1.msra.mxu0 0.0
    %403 = vmatprep.subr.mxu0 0.0
    %404 = vmatpush1.msra.mxu0 0.0
    %405 = vmatprep.subr.mxu0 0.0
    %406 = vmatpush1.msra.mxu0 0.0
    %407 = vmatprep.subr.mxu0 0.0
    %408 = vmatpush1.msra.mxu0 0.0
    %409 = vmatprep.subr.mxu0 0.0
    %410 = vmatpush1.msra.mxu0 0.0
    %411 = vmatprep.subr.mxu0 0.0
    %412 = vmatpush1.msra.mxu0 0.0
    %413 = vmatprep.subr.mxu0 0.0
    %414 = vmatpush1.msra.mxu0 0.0
    %415 = vmatprep.subr.mxu0 0.0
    %416 = vmatpush1.msra.mxu0 0.0
    %417 = vmatprep.mubr.f32.mxu0 0.0
    %418 = vmatmul.mubr.f32.gmra.mrb[0].mxu0 %v267
    %v419 = vpop.f32.mrb[0].mxu0
    %v420 = vadd.f32 %v348, %v419
    %v421 = vpop.f32.mrb[0].mxu0
    %422 = vdwg.mxu0
    %v425 = vunpack.c.l.s4 1966171168
    %v426 = vunpack.c.0.s8 %v425
    %v427 = vlaneseq
    %v428 = vshrl.u32 %v427, 7
    %v429 = vsub.s32 %v426, %v428
    %v430 = vrot.slane %v420, %v429
    %v431 = vcombine.high %v430, %v430
    %v433 = vunpack.c.l.s4 1966171168
    %v434 = vunpack.c.0.s8 %v433
    %v435 = vlaneseq
    %v436 = vshrl.u32 %v435, 7
    %v437 = vsub.s32 %v434, %v436
    %v438 = vrot.slane %v430, %v437
    %v440 = vunpack.c.l.s4 1966171168
    %v441 = vunpack.c.0.s8 %v440
    %v442 = vlaneseq
    %v443 = vshrl.u32 %v442, 7
    %v444 = vsub.s32 %v441, %v443
    %v445 = vrot.slane %v431, %v444
    %v446 = vlaneseq
    %v447 = vshrl.u32 %v446, 7
    %v448 = vsub.s32 0, %v447
    %v449 = vrot.slane %v438, %v448
    %v450 = vlaneseq
    %v451 = vshrl.u32 %v450, 7
    %v452 = vsub.s32 0, %v451
    %v453 = vrot.slane %v445, %v452
    %v456 = vmul.f32 %v449, %v161
    %v457 = vmul.f32 %v453, %v166
    %v458 = vld [vmem:[%s9] sm:$0xff]
    %v459 = vld [vmem:[%s9 + $0x8] sm:$0xff]
    %v460 = vld [vmem:[%s9 + $0x10] sm:$0xff]
    %v461 = vld [vmem:[%s9 + $0x18] sm:$0xff]
    %vm462 = vcmask 261120
    %v464 = vsel %vm462, %v456, 0
    %v467 = vsel %vm462, %v457, 0
    %469 = vmatprep.subr.mxu0 0.0
    %470 = vmatpush1.msra.mxu0 %v458
    %471 = vmatprep.subr.mxu0 0.0
    %472 = vmatpush1.msra.mxu0 %v459
    %473 = vmatprep.subr.mxu0 0.0
    %474 = vmatpush1.msra.mxu0 %v460
    %475 = vmatprep.subr.mxu0 0.0
    %476 = vmatpush1.msra.mxu0 %v461
    %477 = vmatprep.subr.mxu0 0.0
    %478 = vmatpush1.msra.mxu0 0.0
    %479 = vmatprep.subr.mxu0 0.0
    %480 = vmatpush1.msra.mxu0 0.0
    %481 = vmatprep.subr.mxu0 0.0
    %482 = vmatpush1.msra.mxu0 0.0
    %483 = vmatprep.subr.mxu0 0.0
    %484 = vmatpush1.msra.mxu0 0.0
    %485 = vmatprep.subr.mxu0 0.0
    %486 = vmatpush1.msra.mxu0 0.0
    %487 = vmatprep.subr.mxu0 0.0
    %488 = vmatpush1.msra.mxu0 0.0
    %489 = vmatprep.subr.mxu0 0.0
    %490 = vmatpush1.msra.mxu0 0.0
    %491 = vmatprep.subr.mxu0 0.0
    %492 = vmatpush1.msra.mxu0 0.0
    %493 = vmatprep.subr.mxu0 0.0
    %494 = vmatpush1.msra.mxu0 0.0
    %495 = vmatprep.subr.mxu0 0.0
    %496 = vmatpush1.msra.mxu0 0.0
    %497 = vmatprep.subr.mxu0 0.0
    %498 = vmatpush1.msra.mxu0 0.0
    %499 = vmatprep.subr.mxu0 0.0
    %500 = vmatpush1.msra.mxu0 0.0
    %501 = vmatprep.subr.mxu0 0.0
    %502 = vmatpush1.msra.mxu0 0.0
    %503 = vmatprep.subr.mxu0 0.0
    %504 = vmatpush1.msra.mxu0 0.0
    %505 = vmatprep.subr.mxu0 0.0
    %506 = vmatpush1.msra.mxu0 0.0
    %507 = vmatprep.subr.mxu0 0.0
    %508 = vmatpush1.msra.mxu0 0.0
    %509 = vmatprep.subr.mxu0 0.0
    %510 = vmatpush1.msra.mxu0 0.0
    %511 = vmatprep.subr.mxu0 0.0
    %512 = vmatpush1.msra.mxu0 0.0
    %513 = vmatprep.subr.mxu0 0.0
    %514 = vmatpush1.msra.mxu0 0.0
    %515 = vmatprep.subr.mxu0 0.0
    %516 = vmatpush1.msra.mxu0 0.0
    %517 = vmatprep.subr.mxu0 0.0
    %518 = vmatpush1.msra.mxu0 0.0
    %519 = vmatprep.subr.mxu0 0.0
    %520 = vmatpush1.msra.mxu0 0.0
    %521 = vmatprep.subr.mxu0 0.0
    %522 = vmatpush1.msra.mxu0 0.0
    %523 = vmatprep.subr.mxu0 0.0
    %524 = vmatpush1.msra.mxu0 0.0
    %525 = vmatprep.subr.mxu0 0.0
    %526 = vmatpush1.msra.mxu0 0.0
    %527 = vmatprep.subr.mxu0 0.0
    %528 = vmatpush1.msra.mxu0 0.0
    %529 = vmatprep.subr.mxu0 0.0
    %530 = vmatpush1.msra.mxu0 0.0
    %531 = vmatprep.subr.mxu0 0.0
    %532 = vmatpush1.msra.mxu0 0.0
    %533 = vmatprep.mubr.f32.mxu0 0.0
    %534 = vmatmul.mubr.f32.gmra.mrb[0].mxu0 %v464
    %v535 = vpop.f32.mrb[0].mxu0
    %v536 = vadd.f32 0.0, %v535
    %v537 = vpop.f32.mrb[0].mxu0
    %538 = vmatprep.mubr.f32.mxu0 0.0
    %539 = vmatmul.mubr.f32.gmra.mrb[0].mxu0 %v467
    %v540 = vpop.f32.mrb[0].mxu0
    %v541 = vadd.f32 0.0, %v540
    %v542 = vpop.f32.mrb[0].mxu0
    %543 = vdwg.mxu0
    %v544 = vsel %vm462, %v536, -inf
    %v545 = vrot.slane %v544, 4
    %v546 = vmax.f32 %v544, %v545
    %v547 = vrot.slane %v546, 2
    %v548 = vmax.f32 %v546, %v547
    %v549 = vrot.slane %v548, 1
    %v550 = vmax.f32 %v548, %v549
    %v551 = vsel %vm462, %v541, -inf
    %v552 = vrot.slane %v551, 4
    %v553 = vmax.f32 %v551, %v552
    %v554 = vrot.slane %v553, 2
    %v555 = vmax.f32 %v553, %v554
    %v556 = vrot.slane %v555, 1
    %v557 = vmax.f32 %v555, %v556
    %v558 = vsub.f32 %v536, %v550
    %v559 = vsub.f32 %v541, %v557
    %v560 = vmul.f32 %v558, 1.442695
    %v561 = vpow.pop %v560
    %v562 = vmul.f32 %v559, 1.442695
    %v563 = vpow.pop %v562
    %v564 = vsel %vm462, %v561, 0.0
    %v565 = vrot.slane %v564, 4
    %v566 = vadd.f32 %v564, %v565
    %v567 = vrot.slane %v566, 2
    %v568 = vadd.f32 %v566, %v567
    %v569 = vrot.slane %v568, 1
    %v570 = vadd.f32 %v568, %v569
    %v571 = vsel %vm462, %v563, 0.0
    %v572 = vrot.slane %v571, 4
    %v573 = vadd.f32 %v571, %v572
    %v574 = vrot.slane %v573, 2
    %v575 = vadd.f32 %v573, %v574
    %v576 = vrot.slane %v575, 1
    %v577 = vadd.f32 %v575, %v576
    %v578 = vrcp.pop %v570
    %v579 = vrcp.pop %v577
    %v580 = vmul.f32 %v561, %v578
    %v581 = vmul.f32 %v563, %v579
    %v582 = vmul.f32 %v580, %v247
    %v583 = vmul.f32 %v581, %v252
    %v584 = vsel %vm462, %v582, 0.0
    %v585 = vrot.slane %v584, 4
    %v586 = vadd.f32 %v584, %v585
    %v587 = vrot.slane %v586, 2
    %v588 = vadd.f32 %v586, %v587
    %v589 = vrot.slane %v588, 1
    %v590 = vadd.f32 %v588, %v589
    %v591 = vsel %vm462, %v583, 0.0
    %v592 = vrot.slane %v591, 4
    %v593 = vadd.f32 %v591, %v592
    %v594 = vrot.slane %v593, 2
    %v595 = vadd.f32 %v593, %v594
    %v596 = vrot.slane %v595, 1
    %v597 = vadd.f32 %v595, %v596
    %v598 = vld [vmem:[%s10] sm:$0xff]
    %v599 = vld [vmem:[%s10 + $0x8] sm:$0xff]
    %v600 = vld [vmem:[%s10 + $0x10] sm:$0xff]
    %v601 = vld [vmem:[%s10 + $0x18] sm:$0xff]
    %v602 = vld [vmem:[%s11] sm:$0x1]
    %v604 = vlaneseq
    %v605 = vshrl.u32 %v604, 7
    %v606 = vsub.s32 0, %v605
    %v607 = vrot.slane %v602, %v606
    %v611 = vsel %vm265, %v597, %v590
    %v612 = vsel %vm462, %v611, 0
    %614 = vmatprep.subr.mxu0 0.0
    %615 = vmatpush1.msra.mxu0 %v598
    %616 = vmatprep.subr.mxu0 0.0
    %617 = vmatpush1.msra.mxu0 %v599
    %618 = vmatprep.subr.mxu0 0.0
    %619 = vmatpush1.msra.mxu0 %v600
    %620 = vmatprep.subr.mxu0 0.0
    %621 = vmatpush1.msra.mxu0 %v601
    %622 = vmatprep.subr.mxu0 0.0
    %623 = vmatpush1.msra.mxu0 0.0
    %624 = vmatprep.subr.mxu0 0.0
    %625 = vmatpush1.msra.mxu0 0.0
    %626 = vmatprep.subr.mxu0 0.0
    %627 = vmatpush1.msra.mxu0 0.0
    %628 = vmatprep.subr.mxu0 0.0
    %629 = vmatpush1.msra.mxu0 0.0
    %630 = vmatprep.subr.mxu0 0.0
    %631 = vmatpush1.msra.mxu0 0.0
    %632 = vmatprep.subr.mxu0 0.0
    %633 = vmatpush1.msra.mxu0 0.0
    %634 = vmatprep.subr.mxu0 0.0
    %635 = vmatpush1.msra.mxu0 0.0
    %636 = vmatprep.subr.mxu0 0.0
    %637 = vmatpush1.msra.mxu0 0.0
    %638 = vmatprep.subr.mxu0 0.0
    %639 = vmatpush1.msra.mxu0 0.0
    %640 = vmatprep.subr.mxu0 0.0
    %641 = vmatpush1.msra.mxu0 0.0
    %642 = vmatprep.subr.mxu0 0.0
    %643 = vmatpush1.msra.mxu0 0.0
    %644 = vmatprep.subr.mxu0 0.0
    %645 = vmatpush1.msra.mxu0 0.0
    %646 = vmatprep.subr.mxu0 0.0
    %647 = vmatpush1.msra.mxu0 0.0
    %648 = vmatprep.subr.mxu0 0.0
    %649 = vmatpush1.msra.mxu0 0.0
    %650 = vmatprep.subr.mxu0 0.0
    %651 = vmatpush1.msra.mxu0 0.0
    %652 = vmatprep.subr.mxu0 0.0
    %653 = vmatpush1.msra.mxu0 0.0
    %654 = vmatprep.subr.mxu0 0.0
    %655 = vmatpush1.msra.mxu0 0.0
    %656 = vmatprep.subr.mxu0 0.0
    %657 = vmatpush1.msra.mxu0 0.0
    %658 = vmatprep.subr.mxu0 0.0
    %659 = vmatpush1.msra.mxu0 0.0
    %660 = vmatprep.subr.mxu0 0.0
    %661 = vmatpush1.msra.mxu0 0.0
    %662 = vmatprep.subr.mxu0 0.0
    %663 = vmatpush1.msra.mxu0 0.0
    %664 = vmatprep.subr.mxu0 0.0
    %665 = vmatpush1.msra.mxu0 0.0
    %666 = vmatprep.subr.mxu0 0.0
    %667 = vmatpush1.msra.mxu0 0.0
    %668 = vmatprep.subr.mxu0 0.0
    %669 = vmatpush1.msra.mxu0 0.0
    %670 = vmatprep.subr.mxu0 0.0
    %671 = vmatpush1.msra.mxu0 0.0
    %672 = vmatprep.subr.mxu0 0.0
    %673 = vmatpush1.msra.mxu0 0.0
    %674 = vmatprep.subr.mxu0 0.0
    %675 = vmatpush1.msra.mxu0 0.0
    %676 = vmatprep.subr.mxu0 0.0
    %677 = vmatpush1.msra.mxu0 0.0
    %678 = vmatprep.mubr.f32.mxu0 0.0
    %679 = vmatmul.mubr.f32.gmra.mrb[0].mxu0 %v612
    %v680 = vpop.f32.mrb[0].mxu0
    %v681 = vadd.f32 %v607, %v680
    %v682 = vpop.f32.mrb[0].mxu0
    %683 = vdwg.mxu0
    %v684 = vadd.f32 %v339, %v681
    %vm685 = vcmask 254976
    %v686 = vsel %vm685, %v684, 0.0
    %687 = vadd.xlane.f32.xlu0 %v686
    %v688 = vpop.xlane.xlu0 %687
    %v689 = vrcp.pop 32.0
    %v690 = vmul.f32 %v688, %v689
    %v691 = vsub.f32 %v684, %v690
    %v692 = vmul.f32 %v691, %v691
    %v693 = vsel %vm685, %v692, 0.0
    %694 = vadd.xlane.f32.xlu0 %v693
    %v695 = vpop.xlane.xlu0 %694
    %v696 = vmul.f32 %v695, %v689
    %v697 = vadd.f32 %v696, 1e-05
    %v698 = vrsqrt.pop %v697
    %v699 = vmul.f32 %v691, %v698
    %v700 = vld [vmem:[%s12] sm:$0x1]
    %v702 = vlaneseq
    %v703 = vshrl.u32 %v702, 7
    %v704 = vsub.s32 0, %v703
    %v705 = vrot.slane %v700, %v704
    %v707 = vmul.f32 %v699, %v705
    %v708 = vld [vmem:[%s13] sm:$0x1]
    %v710 = vlaneseq
    %v711 = vshrl.u32 %v710, 7
    %v712 = vsub.s32 0, %v711
    %v713 = vrot.slane %v708, %v712
    %v715 = vadd.f32 %v707, %v713
    %v716 = vpack.c.bf16 %v715, %v715
    %v717 = vld [vmem:[%s14] sm:$0xff]
    %v718 = vld [vmem:[%s14 + $0x8] sm:$0xff]
    %v719 = vld [vmem:[%s14 + $0x10] sm:$0xff]
    %v720 = vld [vmem:[%s14 + $0x18] sm:$0xff]
    %v721 = vld [vmem:[%s14 + $0x20] sm:$0xff]
    %v722 = vld [vmem:[%s14 + $0x28] sm:$0xff]
    %v723 = vld [vmem:[%s14 + $0x30] sm:$0xff]
    %v724 = vld [vmem:[%s14 + $0x38] sm:$0xff]
    %v725 = vld [vmem:[%s14 + $0x40] sm:$0xff]
    %v726 = vld [vmem:[%s14 + $0x48] sm:$0xff]
    %v727 = vld [vmem:[%s14 + $0x50] sm:$0xff]
    %v728 = vld [vmem:[%s14 + $0x58] sm:$0xff]
    %v729 = vld [vmem:[%s14 + $0x60] sm:$0xff]
    %v730 = vld [vmem:[%s14 + $0x68] sm:$0xff]
    %v731 = vld [vmem:[%s14 + $0x70] sm:$0xff]
    %v732 = vld [vmem:[%s14 + $0x78] sm:$0xff]
    %v733 = vld [vmem:[%s14 + $0x80] sm:$0xff]
    %v734 = vld [vmem:[%s14 + $0x88] sm:$0xff]
    %v735 = vld [vmem:[%s14 + $0x90] sm:$0xff]
    %v736 = vld [vmem:[%s14 + $0x98] sm:$0xff]
    %v737 = vld [vmem:[%s14 + $0xa0] sm:$0xff]
    %v738 = vld [vmem:[%s14 + $0xa8] sm:$0xff]
    %v739 = vld [vmem:[%s14 + $0xb0] sm:$0xff]
    %v740 = vld [vmem:[%s14 + $0xb8] sm:$0xff]
    %v741 = vld [vmem:[%s14 + $0xc0] sm:$0xff]
    %v742 = vld [vmem:[%s14 + $0xc8] sm:$0xff]
    %v743 = vld [vmem:[%s14 + $0xd0] sm:$0xff]
    %v744 = vld [vmem:[%s14 + $0xd8] sm:$0xff]
    %v745 = vld [vmem:[%s14 + $0xe0] sm:$0xff]
    %v746 = vld [vmem:[%s14 + $0xe8] sm:$0xff]
    %v747 = vld [vmem:[%s14 + $0xf0] sm:$0xff]
    %v748 = vld [vmem:[%s14 + $0xf8] sm:$0xff]
    %v749 = vld [vmem:[%s15] sm:$0xff]
    %v750 = vld [vmem:[%s15 + $0x8] sm:$0xff]
    %v753 = vlaneseq
    %v754 = vshrl.u32 %v753, 7
    %v755 = vsub.s32 0, %v754
    %v756 = vrot.slane %v749, %v755
    %v757 = vlaneseq
    %v758 = vshrl.u32 %v757, 7
    %v759 = vsub.s32 1, %v758
    %v760 = vrot.slane %v749, %v759
    %v761 = vlaneseq
    %v762 = vshrl.u32 %v761, 7
    %v763 = vsub.s32 2, %v762
    %v764 = vrot.slane %v749, %v763
    %v765 = vlaneseq
    %v766 = vshrl.u32 %v765, 7
    %v767 = vsub.s32 3, %v766
    %v768 = vrot.slane %v749, %v767
    %v769 = vlaneseq
    %v770 = vshrl.u32 %v769, 7
    %v771 = vsub.s32 4, %v770
    %v772 = vrot.slane %v749, %v771
    %v773 = vlaneseq
    %v774 = vshrl.u32 %v773, 7
    %v775 = vsub.s32 5, %v774
    %v776 = vrot.slane %v749, %v775
    %v777 = vlaneseq
    %v778 = vshrl.u32 %v777, 7
    %v779 = vsub.s32 6, %v778
    %v780 = vrot.slane %v749, %v779
    %v781 = vlaneseq
    %v782 = vshrl.u32 %v781, 7
    %v783 = vsub.s32 7, %v782
    %v784 = vrot.slane %v749, %v783
    %v785 = vlaneseq
    %v786 = vshrl.u32 %v785, 7
    %v787 = vsub.s32 0, %v786
    %v788 = vrot.slane %v750, %v787
    %v789 = vlaneseq
    %v790 = vshrl.u32 %v789, 7
    %v791 = vsub.s32 1, %v790
    %v792 = vrot.slane %v750, %v791
    %v793 = vlaneseq
    %v794 = vshrl.u32 %v793, 7
    %v795 = vsub.s32 2, %v794
    %v796 = vrot.slane %v750, %v795
    %v797 = vlaneseq
    %v798 = vshrl.u32 %v797, 7
    %v799 = vsub.s32 3, %v798
    %v800 = vrot.slane %v750, %v799
    %v801 = vlaneseq
    %v802 = vshrl.u32 %v801, 7
    %v803 = vsub.s32 4, %v802
    %v804 = vrot.slane %v750, %v803
    %v805 = vlaneseq
    %v806 = vshrl.u32 %v805, 7
    %v807 = vsub.s32 5, %v806
    %v808 = vrot.slane %v750, %v807
    %v809 = vlaneseq
    %v810 = vshrl.u32 %v809, 7
    %v811 = vsub.s32 6, %v810
    %v812 = vrot.slane %v750, %v811
    %v813 = vlaneseq
    %v814 = vshrl.u32 %v813, 7
    %v815 = vsub.s32 7, %v814
    %v816 = vrot.slane %v750, %v815
    %v865 = vunpack.c.l.b16 %v717
    %v866 = vunpack.c.h.b16 %v717
    %v867 = vunpack.c.l.b16 %v718
    %v868 = vunpack.c.h.b16 %v718
    %v869 = vunpack.c.l.b16 %v719
    %v870 = vunpack.c.h.b16 %v719
    %v871 = vunpack.c.l.b16 %v720
    %v872 = vunpack.c.h.b16 %v720
    %v873 = vunpack.c.l.b16 %v721
    %v874 = vunpack.c.h.b16 %v721
    %v875 = vunpack.c.l.b16 %v722
    %v876 = vunpack.c.h.b16 %v722
    %v877 = vunpack.c.l.b16 %v723
    %v878 = vunpack.c.h.b16 %v723
    %v879 = vunpack.c.l.b16 %v724
    %v880 = vunpack.c.h.b16 %v724
    %v881 = vunpack.c.l.b16 %v725
    %v882 = vunpack.c.h.b16 %v725
    %v883 = vunpack.c.l.b16 %v726
    %v884 = vunpack.c.h.b16 %v726
    %v885 = vunpack.c.l.b16 %v727
    %v886 = vunpack.c.h.b16 %v727
    %v887 = vunpack.c.l.b16 %v728
    %v888 = vunpack.c.h.b16 %v728
    %v889 = vunpack.c.l.b16 %v729
    %v890 = vunpack.c.h.b16 %v729
    %v891 = vunpack.c.l.b16 %v730
    %v892 = vunpack.c.h.b16 %v730
    %v893 = vunpack.c.l.b16 %v731
    %v894 = vunpack.c.h.b16 %v731
    %v895 = vunpack.c.l.b16 %v732
    %v896 = vunpack.c.h.b16 %v732
    %v897 = vunpack.c.l.b16 %v733
    %v898 = vunpack.c.h.b16 %v733
    %v899 = vunpack.c.l.b16 %v734
    %v900 = vunpack.c.h.b16 %v734
    %v901 = vunpack.c.l.b16 %v735
    %v902 = vunpack.c.h.b16 %v735
    %v903 = vunpack.c.l.b16 %v736
    %v904 = vunpack.c.h.b16 %v736
    %v905 = vunpack.c.l.b16 %v737
    %v906 = vunpack.c.h.b16 %v737
    %v907 = vunpack.c.l.b16 %v738
    %v908 = vunpack.c.h.b16 %v738
    %v909 = vunpack.c.l.b16 %v739
    %v910 = vunpack.c.h.b16 %v739
    %v911 = vunpack.c.l.b16 %v740
    %v912 = vunpack.c.h.b16 %v740
    %v913 = vunpack.c.l.b16 %v741
    %v914 = vunpack.c.h.b16 %v741
    %v915 = vunpack.c.l.b16 %v742
    %v916 = vunpack.c.h.b16 %v742
    %v917 = vunpack.c.l.b16 %v743
    %v918 = vunpack.c.h.b16 %v743
    %v919 = vunpack.c.l.b16 %v744
    %v920 = vunpack.c.h.b16 %v744
    %v921 = vunpack.c.l.b16 %v745
    %v922 = vunpack.c.h.b16 %v745
    %v923 = vunpack.c.l.b16 %v746
    %v924 = vunpack.c.h.b16 %v746
    %v925 = vunpack.c.l.b16 %v747
    %v926 = vunpack.c.h.b16 %v747
    %v927 = vunpack.c.l.b16 %v748
    %v928 = vunpack.c.h.b16 %v748
    %v929 = vpack.c.b16 %v881, %v865
    %v930 = vpack.c.b16 %v882, %v866
    %v931 = vpack.c.b16 %v883, %v867
    %v932 = vpack.c.b16 %v884, %v868
    %v933 = vpack.c.b16 %v885, %v869
    %v934 = vpack.c.b16 %v886, %v870
    %v935 = vpack.c.b16 %v887, %v871
    %v936 = vpack.c.b16 %v888, %v872
    %v937 = vpack.c.b16 %v889, %v873
    %v938 = vpack.c.b16 %v890, %v874
    %v939 = vpack.c.b16 %v891, %v875
    %v940 = vpack.c.b16 %v892, %v876
    %v941 = vpack.c.b16 %v893, %v877
    %v942 = vpack.c.b16 %v894, %v878
    %v943 = vpack.c.b16 %v895, %v879
    %v944 = vpack.c.b16 %v896, %v880
    %v945 = vpack.c.b16 %v913, %v897
    %v946 = vpack.c.b16 %v914, %v898
    %v947 = vpack.c.b16 %v915, %v899
    %v948 = vpack.c.b16 %v916, %v900
    %v949 = vpack.c.b16 %v917, %v901
    %v950 = vpack.c.b16 %v918, %v902
    %v951 = vpack.c.b16 %v919, %v903
    %v952 = vpack.c.b16 %v920, %v904
    %v953 = vpack.c.b16 %v921, %v905
    %v954 = vpack.c.b16 %v922, %v906
    %v955 = vpack.c.b16 %v923, %v907
    %v956 = vpack.c.b16 %v924, %v908
    %v957 = vpack.c.b16 %v925, %v909
    %v958 = vpack.c.b16 %v926, %v910
    %v959 = vpack.c.b16 %v927, %v911
    %v960 = vpack.c.b16 %v928, %v912
    %v994 = vsel %vm462, %v716, 0
    %996 = vmatprep.subr.bf16.mxu0 %v930
    %997 = vmatpush1.bf16.msra.mxu0 %v929
    %998 = vmatprep.subr.bf16.mxu0 %v946
    %999 = vmatpush1.bf16.msra.mxu0 %v945
    %1000 = vmatprep.subr.bf16.mxu0 0
    %1001 = vmatpush1.bf16.msra.mxu0 0
    %1002 = vmatprep.subr.bf16.mxu0 0
    %1003 = vmatpush1.bf16.msra.mxu0 0
    %1004 = vmatprep.subr.bf16.mxu0 0
    %1005 = vmatpush1.bf16.msra.mxu0 0
    %1006 = vmatprep.subr.bf16.mxu0 0
    %1007 = vmatpush1.bf16.msra.mxu0 0
    %1008 = vmatprep.subr.bf16.mxu0 0
    %1009 = vmatpush1.bf16.msra.mxu0 0
    %1010 = vmatprep.subr.bf16.mxu0 0
    %1011 = vmatpush1.bf16.msra.mxu0 0
    %1012 = vmatprep.subr.bf16.mxu0 0
    %1013 = vmatpush1.bf16.msra.mxu0 0
    %1014 = vmatprep.subr.bf16.mxu0 0
    %1015 = vmatpush1.bf16.msra.mxu0 0
    %1016 = vmatprep.subr.bf16.mxu0 0
    %1017 = vmatpush1.bf16.msra.mxu0 0
    %1018 = vmatprep.subr.bf16.mxu0 0
    %1019 = vmatpush1.bf16.msra.mxu0 0
    %1020 = vmatprep.subr.bf16.mxu0 0
    %1021 = vmatpush1.bf16.msra.mxu0 0
    %1022 = vmatprep.subr.bf16.mxu0 0
    %1023 = vmatpush1.bf16.msra.mxu0 0
    %1024 = vmatprep.subr.bf16.mxu0 0
    %1025 = vmatpush1.bf16.msra.mxu0 0
    %1026 = vmatprep.subr.bf16.mxu0 0
    %1027 = vmatpush1.bf16.msra.mxu0 0
    %1028 = vmatprep.mubr.bf16.mxu0 0
    %1029 = vmatmul.mubr.bf16.gmra.mrb[0].mxu0 %v994
    %v1030 = vpop.f32.mrb[0].mxu0
    %v1031 = vadd.f32 %v756, %v1030
    %v1032 = vpop.f32.mrb[0].mxu0
    %v1033 = vadd.f32 %v760, %v1032
    %v1034 = vpop.f32.mrb[0].mxu0
    %v1035 = vpop.f32.mrb[0].mxu0
    %1036 = vdwg.mxu0
    %1037 = vmatprep.subr.bf16.mxu0 %v932
    %1038 = vmatpush1.bf16.msra.mxu0 %v931
    %1039 = vmatprep.subr.bf16.mxu0 %v948
    %1040 = vmatpush1.bf16.msra.mxu0 %v947
    %1041 = vmatprep.subr.bf16.mxu0 0
    %1042 = vmatpush1.bf16.msra.mxu0 0
    %1043 = vmatprep.subr.bf16.mxu0 0
    %1044 = vmatpush1.bf16.msra.mxu0 0
    %1045 = vmatprep.subr.bf16.mxu0 0
    %1046 = vmatpush1.bf16.msra.mxu0 0
    %1047 = vmatprep.subr.bf16.mxu0 0
    %1048 = vmatpush1.bf16.msra.mxu0 0
    %1049 = vmatprep.subr.bf16.mxu0 0
    %1050 = vmatpush1.bf16.msra.mxu0 0
    %1051 = vmatprep.subr.bf16.mxu0 0
    %1052 = vmatpush1.bf16.msra.mxu0 0
    %1053 = vmatprep.subr.bf16.mxu0 0
    %1054 = vmatpush1.bf16.msra.mxu0 0
    %1055 = vmatprep.subr.bf16.mxu0 0
    %1056 = vmatpush1.bf16.msra.mxu0 0
    %1057 = vmatprep.subr.bf16.mxu0 0
    %1058 = vmatpush1.bf16.msra.mxu0 0
    %1059 = vmatprep.subr.bf16.mxu0 0
    %1060 = vmatpush1.bf16.msra.mxu0 0
    %1061 = vmatprep.subr.bf16.mxu0 0
    %1062 = vmatpush1.bf16.msra.mxu0 0
    %1063 = vmatprep.subr.bf16.mxu0 0
    %1064 = vmatpush1.bf16.msra.mxu0 0
    %1065 = vmatprep.subr.bf16.mxu0 0
    %1066 = vmatpush1.bf16.msra.mxu0 0
    %1067 = vmatprep.subr.bf16.mxu0 0
    %1068 = vmatpush1.bf16.msra.mxu0 0
    %1069 = vmatprep.mubr.bf16.mxu0 0
    %1070 = vmatmul.mubr.bf16.gmra.mrb[0].mxu0 %v994
    %v1071 = vpop.f32.mrb[0].mxu0
    %v1072 = vadd.f32 %v764, %v1071
    %v1073 = vpop.f32.mrb[0].mxu0
    %v1074 = vadd.f32 %v768, %v1073
    %v1075 = vpop.f32.mrb[0].mxu0
    %v1076 = vpop.f32.mrb[0].mxu0
    %1077 = vdwg.mxu0
    %1078 = vmatprep.subr.bf16.mxu0 %v934
    %1079 = vmatpush1.bf16.msra.mxu0 %v933
    %1080 = vmatprep.subr.bf16.mxu0 %v950
    %1081 = vmatpush1.bf16.msra.mxu0 %v949
    %1082 = vmatprep.subr.bf16.mxu0 0
    %1083 = vmatpush1.bf16.msra.mxu0 0
    %1084 = vmatprep.subr.bf16.mxu0 0
    %1085 = vmatpush1.bf16.msra.mxu0 0
    %1086 = vmatprep.subr.bf16.mxu0 0
    %1087 = vmatpush1.bf16.msra.mxu0 0
    %1088 = vmatprep.subr.bf16.mxu0 0
    %1089 = vmatpush1.bf16.msra.mxu0 0
    %1090 = vmatprep.subr.bf16.mxu0 0
    %1091 = vmatpush1.bf16.msra.mxu0 0
    %1092 = vmatprep.subr.bf16.mxu0 0
    %1093 = vmatpush1.bf16.msra.mxu0 0
    %1094 = vmatprep.subr.bf16.mxu0 0
    %1095 = vmatpush1.bf16.msra.mxu0 0
    %1096 = vmatprep.subr.bf16.mxu0 0
    %1097 = vmatpush1.bf16.msra.mxu0 0
    %1098 = vmatprep.subr.bf16.mxu0 0
    %1099 = vmatpush1.bf16.msra.mxu0 0
    %1100 = vmatprep.subr.bf16.mxu0 0
    %1101 = vmatpush1.bf16.msra.mxu0 0
    %1102 = vmatprep.subr.bf16.mxu0 0
    %1103 = vmatpush1.bf16.msra.mxu0 0
    %1104 = vmatprep.subr.bf16.mxu0 0
    %1105 = vmatpush1.bf16.msra.mxu0 0
    %1106 = vmatprep.subr.bf16.mxu0 0
    %1107 = vmatpush1.bf16.msra.mxu0 0
    %1108 = vmatprep.subr.bf16.mxu0 0
    %1109 = vmatpush1.bf16.msra.mxu0 0
    %1110 = vmatprep.mubr.bf16.mxu0 0
    %1111 = vmatmul.mubr.bf16.gmra.mrb[0].mxu0 %v994
    %v1112 = vpop.f32.mrb[0].mxu0
    %v1113 = vadd.f32 %v772, %v1112
    %v1114 = vpop.f32.mrb[0].mxu0
    %v1115 = vadd.f32 %v776, %v1114
    %v1116 = vpop.f32.mrb[0].mxu0
    %v1117 = vpop.f32.mrb[0].mxu0
    %1118 = vdwg.mxu0
    %1119 = vmatprep.subr.bf16.mxu0 %v936
    %1120 = vmatpush1.bf16.msra.mxu0 %v935
    %1121 = vmatprep.subr.bf16.mxu0 %v952
    %1122 = vmatpush1.bf16.msra.mxu0 %v951
    %1123 = vmatprep.subr.bf16.mxu0 0
    %1124 = vmatpush1.bf16.msra.mxu0 0
    %1125 = vmatprep.subr.bf16.mxu0 0
    %1126 = vmatpush1.bf16.msra.mxu0 0
    %1127 = vmatprep.subr.bf16.mxu0 0
    %1128 = vmatpush1.bf16.msra.mxu0 0
    %1129 = vmatprep.subr.bf16.mxu0 0
    %1130 = vmatpush1.bf16.msra.mxu0 0
    %1131 = vmatprep.subr.bf16.mxu0 0
    %1132 = vmatpush1.bf16.msra.mxu0 0
    %1133 = vmatprep.subr.bf16.mxu0 0
    %1134 = vmatpush1.bf16.msra.mxu0 0
    %1135 = vmatprep.subr.bf16.mxu0 0
    %1136 = vmatpush1.bf16.msra.mxu0 0
    %1137 = vmatprep.subr.bf16.mxu0 0
    %1138 = vmatpush1.bf16.msra.mxu0 0
    %1139 = vmatprep.subr.bf16.mxu0 0
    %1140 = vmatpush1.bf16.msra.mxu0 0
    %1141 = vmatprep.subr.bf16.mxu0 0
    %1142 = vmatpush1.bf16.msra.mxu0 0
    %1143 = vmatprep.subr.bf16.mxu0 0
    %1144 = vmatpush1.bf16.msra.mxu0 0
    %1145 = vmatprep.subr.bf16.mxu0 0
    %1146 = vmatpush1.bf16.msra.mxu0 0
    %1147 = vmatprep.subr.bf16.mxu0 0
    %1148 = vmatpush1.bf16.msra.mxu0 0
    %1149 = vmatprep.subr.bf16.mxu0 0
    %1150 = vmatpush1.bf16.msra.mxu0 0
    %1151 = vmatprep.mubr.bf16.mxu0 0
    %1152 = vmatmul.mubr.bf16.gmra.mrb[0].mxu0 %v994
    %v1153 = vpop.f32.mrb[0].mxu0
    %v1154 = vadd.f32 %v780, %v1153
    %v1155 = vpop.f32.mrb[0].mxu0
    %v1156 = vadd.f32 %v784, %v1155
    %v1157 = vpop.f32.mrb[0].mxu0
    %v1158 = vpop.f32.mrb[0].mxu0
    %1159 = vdwg.mxu0
    %1160 = vmatprep.subr.bf16.mxu0 %v938
    %1161 = vmatpush1.bf16.msra.mxu0 %v937
    %1162 = vmatprep.subr.bf16.mxu0 %v954
    %1163 = vmatpush1.bf16.msra.mxu0 %v953
    %1164 = vmatprep.subr.bf16.mxu0 0
    %1165 = vmatpush1.bf16.msra.mxu0 0
    %1166 = vmatprep.subr.bf16.mxu0 0
    %1167 = vmatpush1.bf16.msra.mxu0 0
    %1168 = vmatprep.subr.bf16.mxu0 0
    %1169 = vmatpush1.bf16.msra.mxu0 0
    %1170 = vmatprep.subr.bf16.mxu0 0
    %1171 = vmatpush1.bf16.msra.mxu0 0
    %1172 = vmatprep.subr.bf16.mxu0 0
    %1173 = vmatpush1.bf16.msra.mxu0 0
    %1174 = vmatprep.subr.bf16.mxu0 0
    %1175 = vmatpush1.bf16.msra.mxu0 0
    %1176 = vmatprep.subr.bf16.mxu0 0
    %1177 = vmatpush1.bf16.msra.mxu0 0
    %1178 = vmatprep.subr.bf16.mxu0 0
    %1179 = vmatpush1.bf16.msra.mxu0 0
    %1180 = vmatprep.subr.bf16.mxu0 0
    %1181 = vmatpush1.bf16.msra.mxu0 0
    %1182 = vmatprep.subr.bf16.mxu0 0
    %1183 = vmatpush1.bf16.msra.mxu0 0
    %1184 = vmatprep.subr.bf16.mxu0 0
    %1185 = vmatpush1.bf16.msra.mxu0 0
    %1186 = vmatprep.subr.bf16.mxu0 0
    %1187 = vmatpush1.bf16.msra.mxu0 0
    %1188 = vmatprep.subr.bf16.mxu0 0
    %1189 = vmatpush1.bf16.msra.mxu0 0
    %1190 = vmatprep.subr.bf16.mxu0 0
    %1191 = vmatpush1.bf16.msra.mxu0 0
    %1192 = vmatprep.mubr.bf16.mxu0 0
    %1193 = vmatmul.mubr.bf16.gmra.mrb[0].mxu0 %v994
    %v1194 = vpop.f32.mrb[0].mxu0
    %v1195 = vadd.f32 %v788, %v1194
    %v1196 = vpop.f32.mrb[0].mxu0
    %v1197 = vadd.f32 %v792, %v1196
    %v1198 = vpop.f32.mrb[0].mxu0
    %v1199 = vpop.f32.mrb[0].mxu0
    %1200 = vdwg.mxu0
    %1201 = vmatprep.subr.bf16.mxu0 %v940
    %1202 = vmatpush1.bf16.msra.mxu0 %v939
    %1203 = vmatprep.subr.bf16.mxu0 %v956
    %1204 = vmatpush1.bf16.msra.mxu0 %v955
    %1205 = vmatprep.subr.bf16.mxu0 0
    %1206 = vmatpush1.bf16.msra.mxu0 0
    %1207 = vmatprep.subr.bf16.mxu0 0
    %1208 = vmatpush1.bf16.msra.mxu0 0
    %1209 = vmatprep.subr.bf16.mxu0 0
    %1210 = vmatpush1.bf16.msra.mxu0 0
    %1211 = vmatprep.subr.bf16.mxu0 0
    %1212 = vmatpush1.bf16.msra.mxu0 0
    %1213 = vmatprep.subr.bf16.mxu0 0
    %1214 = vmatpush1.bf16.msra.mxu0 0
    %1215 = vmatprep.subr.bf16.mxu0 0
    %1216 = vmatpush1.bf16.msra.mxu0 0
    %1217 = vmatprep.subr.bf16.mxu0 0
    %1218 = vmatpush1.bf16.msra.mxu0 0
    %1219 = vmatprep.subr.bf16.mxu0 0
    %1220 = vmatpush1.bf16.msra.mxu0 0
    %1221 = vmatprep.subr.bf16.mxu0 0
    %1222 = vmatpush1.bf16.msra.mxu0 0
    %1223 = vmatprep.subr.bf16.mxu0 0
    %1224 = vmatpush1.bf16.msra.mxu0 0
    %1225 = vmatprep.subr.bf16.mxu0 0
    %1226 = vmatpush1.bf16.msra.mxu0 0
    %1227 = vmatprep.subr.bf16.mxu0 0
    %1228 = vmatpush1.bf16.msra.mxu0 0
    %1229 = vmatprep.subr.bf16.mxu0 0
    %1230 = vmatpush1.bf16.msra.mxu0 0
    %1231 = vmatprep.subr.bf16.mxu0 0
    %1232 = vmatpush1.bf16.msra.mxu0 0
    %1233 = vmatprep.mubr.bf16.mxu0 0
    %1234 = vmatmul.mubr.bf16.gmra.mrb[0].mxu0 %v994
    %v1235 = vpop.f32.mrb[0].mxu0
    %v1236 = vadd.f32 %v796, %v1235
    %v1237 = vpop.f32.mrb[0].mxu0
    %v1238 = vadd.f32 %v800, %v1237
    %v1239 = vpop.f32.mrb[0].mxu0
    %v1240 = vpop.f32.mrb[0].mxu0
    %1241 = vdwg.mxu0
    %1242 = vmatprep.subr.bf16.mxu0 %v942
    %1243 = vmatpush1.bf16.msra.mxu0 %v941
    %1244 = vmatprep.subr.bf16.mxu0 %v958
    %1245 = vmatpush1.bf16.msra.mxu0 %v957
    %1246 = vmatprep.subr.bf16.mxu0 0
    %1247 = vmatpush1.bf16.msra.mxu0 0
    %1248 = vmatprep.subr.bf16.mxu0 0
    %1249 = vmatpush1.bf16.msra.mxu0 0
    %1250 = vmatprep.subr.bf16.mxu0 0
    %1251 = vmatpush1.bf16.msra.mxu0 0
    %1252 = vmatprep.subr.bf16.mxu0 0
    %1253 = vmatpush1.bf16.msra.mxu0 0
    %1254 = vmatprep.subr.bf16.mxu0 0
    %1255 = vmatpush1.bf16.msra.mxu0 0
    %1256 = vmatprep.subr.bf16.mxu0 0
    %1257 = vmatpush1.bf16.msra.mxu0 0
    %1258 = vmatprep.subr.bf16.mxu0 0
    %1259 = vmatpush1.bf16.msra.mxu0 0
    %1260 = vmatprep.subr.bf16.mxu0 0
    %1261 = vmatpush1.bf16.msra.mxu0 0
    %1262 = vmatprep.subr.bf16.mxu0 0
    %1263 = vmatpush1.bf16.msra.mxu0 0
    %1264 = vmatprep.subr.bf16.mxu0 0
    %1265 = vmatpush1.bf16.msra.mxu0 0
    %1266 = vmatprep.subr.bf16.mxu0 0
    %1267 = vmatpush1.bf16.msra.mxu0 0
    %1268 = vmatprep.subr.bf16.mxu0 0
    %1269 = vmatpush1.bf16.msra.mxu0 0
    %1270 = vmatprep.subr.bf16.mxu0 0
    %1271 = vmatpush1.bf16.msra.mxu0 0
    %1272 = vmatprep.subr.bf16.mxu0 0
    %1273 = vmatpush1.bf16.msra.mxu0 0
    %1274 = vmatprep.mubr.bf16.mxu0 0
    %1275 = vmatmul.mubr.bf16.gmra.mrb[0].mxu0 %v994
    %v1276 = vpop.f32.mrb[0].mxu0
    %v1277 = vadd.f32 %v804, %v1276
    %v1278 = vpop.f32.mrb[0].mxu0
    %v1279 = vadd.f32 %v808, %v1278
    %v1280 = vpop.f32.mrb[0].mxu0
    %v1281 = vpop.f32.mrb[0].mxu0
    %1282 = vdwg.mxu0
    %1283 = vmatprep.subr.bf16.mxu0 %v944
    %1284 = vmatpush1.bf16.msra.mxu0 %v943
    %1285 = vmatprep.subr.bf16.mxu0 %v960
    %1286 = vmatpush1.bf16.msra.mxu0 %v959
    %1287 = vmatprep.subr.bf16.mxu0 0
    %1288 = vmatpush1.bf16.msra.mxu0 0
    %1289 = vmatprep.subr.bf16.mxu0 0
    %1290 = vmatpush1.bf16.msra.mxu0 0
    %1291 = vmatprep.subr.bf16.mxu0 0
    %1292 = vmatpush1.bf16.msra.mxu0 0
    %1293 = vmatprep.subr.bf16.mxu0 0
    %1294 = vmatpush1.bf16.msra.mxu0 0
    %1295 = vmatprep.subr.bf16.mxu0 0
    %1296 = vmatpush1.bf16.msra.mxu0 0
    %1297 = vmatprep.subr.bf16.mxu0 0
    %1298 = vmatpush1.bf16.msra.mxu0 0
    %1299 = vmatprep.subr.bf16.mxu0 0
    %1300 = vmatpush1.bf16.msra.mxu0 0
    %1301 = vmatprep.subr.bf16.mxu0 0
    %1302 = vmatpush1.bf16.msra.mxu0 0
    %1303 = vmatprep.subr.bf16.mxu0 0
    %1304 = vmatpush1.bf16.msra.mxu0 0
    %1305 = vmatprep.subr.bf16.mxu0 0
    %1306 = vmatpush1.bf16.msra.mxu0 0
    %1307 = vmatprep.subr.bf16.mxu0 0
    %1308 = vmatpush1.bf16.msra.mxu0 0
    %1309 = vmatprep.subr.bf16.mxu0 0
    %1310 = vmatpush1.bf16.msra.mxu0 0
    %1311 = vmatprep.subr.bf16.mxu0 0
    %1312 = vmatpush1.bf16.msra.mxu0 0
    %1313 = vmatprep.subr.bf16.mxu0 0
    %1314 = vmatpush1.bf16.msra.mxu0 0
    %1315 = vmatprep.mubr.bf16.mxu0 0
    %1316 = vmatmul.mubr.bf16.gmra.mrb[0].mxu0 %v994
    %v1317 = vpop.f32.mrb[0].mxu0
    %v1318 = vadd.f32 %v812, %v1317
    %v1319 = vpop.f32.mrb[0].mxu0
    %v1320 = vadd.f32 %v816, %v1319
    %v1321 = vpop.f32.mrb[0].mxu0
    %v1322 = vpop.f32.mrb[0].mxu0
    %1323 = vdwg.mxu0
    %v1324 = vmax.f32 %v1031, 0.0
    %v1325 = vmax.f32 %v1033, 0.0
    %v1326 = vmax.f32 %v1072, 0.0
    %v1327 = vmax.f32 %v1074, 0.0
    %v1328 = vmax.f32 %v1113, 0.0
    %v1329 = vmax.f32 %v1115, 0.0
    %v1330 = vmax.f32 %v1154, 0.0
    %v1331 = vmax.f32 %v1156, 0.0
    %v1332 = vmax.f32 %v1195, 0.0
    %v1333 = vmax.f32 %v1197, 0.0
    %v1334 = vmax.f32 %v1236, 0.0
    %v1335 = vmax.f32 %v1238, 0.0
    %v1336 = vmax.f32 %v1277, 0.0
    %v1337 = vmax.f32 %v1279, 0.0
    %v1338 = vmax.f32 %v1318, 0.0
    %v1339 = vmax.f32 %v1320, 0.0
    %v1340 = vpack.c.bf16 %v1324, %v1324
    %v1341 = vpack.c.bf16 %v1325, %v1325
    %v1342 = vpack.c.bf16 %v1326, %v1326
    %v1343 = vpack.c.bf16 %v1327, %v1327
    %v1344 = vpack.c.bf16 %v1328, %v1328
    %v1345 = vpack.c.bf16 %v1329, %v1329
    %v1346 = vpack.c.bf16 %v1330, %v1330
    %v1347 = vpack.c.bf16 %v1331, %v1331
    %v1348 = vpack.c.bf16 %v1332, %v1332
    %v1349 = vpack.c.bf16 %v1333, %v1333
    %v1350 = vpack.c.bf16 %v1334, %v1334
    %v1351 = vpack.c.bf16 %v1335, %v1335
    %v1352 = vpack.c.bf16 %v1336, %v1336
    %v1353 = vpack.c.bf16 %v1337, %v1337
    %v1354 = vpack.c.bf16 %v1338, %v1338
    %v1355 = vpack.c.bf16 %v1339, %v1339
    %v1356 = vld [vmem:[%s16] sm:$0xf]
    %v1357 = vld [vmem:[%s16 + $0x4] sm:$0xf]
    %v1358 = vld [vmem:[%s16 + $0x8] sm:$0xf]
    %v1359 = vld [vmem:[%s16 + $0xc] sm:$0xf]
    %v1360 = vld [vmem:[%s16 + $0x10] sm:$0xf]
    %v1361 = vld [vmem:[%s16 + $0x14] sm:$0xf]
    %v1362 = vld [vmem:[%s16 + $0x18] sm:$0xf]
    %v1363 = vld [vmem:[%s16 + $0x1c] sm:$0xf]
    %v1364 = vld [vmem:[%s16 + $0x20] sm:$0xf]
    %v1365 = vld [vmem:[%s16 + $0x24] sm:$0xf]
    %v1366 = vld [vmem:[%s16 + $0x28] sm:$0xf]
    %v1367 = vld [vmem:[%s16 + $0x2c] sm:$0xf]
    %v1368 = vld [vmem:[%s16 + $0x30] sm:$0xf]
    %v1369 = vld [vmem:[%s16 + $0x34] sm:$0xf]
    %v1370 = vld [vmem:[%s16 + $0x38] sm:$0xf]
    %v1371 = vld [vmem:[%s16 + $0x3c] sm:$0xf]
    %v1372 = vld [vmem:[%s16 + $0x40] sm:$0xf]
    %v1373 = vld [vmem:[%s16 + $0x44] sm:$0xf]
    %v1374 = vld [vmem:[%s16 + $0x48] sm:$0xf]
    %v1375 = vld [vmem:[%s16 + $0x4c] sm:$0xf]
    %v1376 = vld [vmem:[%s16 + $0x50] sm:$0xf]
    %v1377 = vld [vmem:[%s16 + $0x54] sm:$0xf]
    %v1378 = vld [vmem:[%s16 + $0x58] sm:$0xf]
    %v1379 = vld [vmem:[%s16 + $0x5c] sm:$0xf]
    %v1380 = vld [vmem:[%s16 + $0x60] sm:$0xf]
    %v1381 = vld [vmem:[%s16 + $0x64] sm:$0xf]
    %v1382 = vld [vmem:[%s16 + $0x68] sm:$0xf]
    %v1383 = vld [vmem:[%s16 + $0x6c] sm:$0xf]
    %v1384 = vld [vmem:[%s16 + $0x70] sm:$0xf]
    %v1385 = vld [vmem:[%s16 + $0x74] sm:$0xf]
    %v1386 = vld [vmem:[%s16 + $0x78] sm:$0xf]
    %v1387 = vld [vmem:[%s16 + $0x7c] sm:$0xf]
    %v1388 = vld [vmem:[%s16 + $0x80] sm:$0xf]
    %v1389 = vld [vmem:[%s16 + $0x84] sm:$0xf]
    %v1390 = vld [vmem:[%s16 + $0x88] sm:$0xf]
    %v1391 = vld [vmem:[%s16 + $0x8c] sm:$0xf]
    %v1392 = vld [vmem:[%s16 + $0x90] sm:$0xf]
    %v1393 = vld [vmem:[%s16 + $0x94] sm:$0xf]
    %v1394 = vld [vmem:[%s16 + $0x98] sm:$0xf]
    %v1395 = vld [vmem:[%s16 + $0x9c] sm:$0xf]
    %v1396 = vld [vmem:[%s16 + $0xa0] sm:$0xf]
    %v1397 = vld [vmem:[%s16 + $0xa4] sm:$0xf]
    %v1398 = vld [vmem:[%s16 + $0xa8] sm:$0xf]
    %v1399 = vld [vmem:[%s16 + $0xac] sm:$0xf]
    %v1400 = vld [vmem:[%s16 + $0xb0] sm:$0xf]
    %v1401 = vld [vmem:[%s16 + $0xb4] sm:$0xf]
    %v1402 = vld [vmem:[%s16 + $0xb8] sm:$0xf]
    %v1403 = vld [vmem:[%s16 + $0xbc] sm:$0xf]
    %v1404 = vld [vmem:[%s16 + $0xc0] sm:$0xf]
    %v1405 = vld [vmem:[%s16 + $0xc4] sm:$0xf]
    %v1406 = vld [vmem:[%s16 + $0xc8] sm:$0xf]
    %v1407 = vld [vmem:[%s16 + $0xcc] sm:$0xf]
    %v1408 = vld [vmem:[%s16 + $0xd0] sm:$0xf]
    %v1409 = vld [vmem:[%s16 + $0xd4] sm:$0xf]
    %v1410 = vld [vmem:[%s16 + $0xd8] sm:$0xf]
    %v1411 = vld [vmem:[%s16 + $0xdc] sm:$0xf]
    %v1412 = vld [vmem:[%s16 + $0xe0] sm:$0xf]
    %v1413 = vld [vmem:[%s16 + $0xe4] sm:$0xf]
    %v1414 = vld [vmem:[%s16 + $0xe8] sm:$0xf]
    %v1415 = vld [vmem:[%s16 + $0xec] sm:$0xf]
    %v1416 = vld [vmem:[%s16 + $0xf0] sm:$0xf]
    %v1417 = vld [vmem:[%s16 + $0xf4] sm:$0xf]
    %v1418 = vld [vmem:[%s16 + $0xf8] sm:$0xf]
    %v1419 = vld [vmem:[%s16 + $0xfc] sm:$0xf]
    %v1420 = vld [vmem:[%s16 + $0x100] sm:$0xf]
    %v1421 = vld [vmem:[%s16 + $0x104] sm:$0xf]
    %v1422 = vld [vmem:[%s16 + $0x108] sm:$0xf]
    %v1423 = vld [vmem:[%s16 + $0x10c] sm:$0xf]
    %v1424 = vld [vmem:[%s16 + $0x110] sm:$0xf]
    %v1425 = vld [vmem:[%s16 + $0x114] sm:$0xf]
    %v1426 = vld [vmem:[%s16 + $0x118] sm:$0xf]
    %v1427 = vld [vmem:[%s16 + $0x11c] sm:$0xf]
    %v1428 = vld [vmem:[%s16 + $0x120] sm:$0xf]
    %v1429 = vld [vmem:[%s16 + $0x124] sm:$0xf]
    %v1430 = vld [vmem:[%s16 + $0x128] sm:$0xf]
    %v1431 = vld [vmem:[%s16 + $0x12c] sm:$0xf]
    %v1432 = vld [vmem:[%s16 + $0x130] sm:$0xf]
    %v1433 = vld [vmem:[%s16 + $0x134] sm:$0xf]
    %v1434 = vld [vmem:[%s16 + $0x138] sm:$0xf]
    %v1435 = vld [vmem:[%s16 + $0x13c] sm:$0xf]
    %v1436 = vld [vmem:[%s16 + $0x140] sm:$0xf]
    %v1437 = vld [vmem:[%s16 + $0x144] sm:$0xf]
    %v1438 = vld [vmem:[%s16 + $0x148] sm:$0xf]
    %v1439 = vld [vmem:[%s16 + $0x14c] sm:$0xf]
    %v1440 = vld [vmem:[%s16 + $0x150] sm:$0xf]
    %v1441 = vld [vmem:[%s16 + $0x154] sm:$0xf]
    %v1442 = vld [vmem:[%s16 + $0x158] sm:$0xf]
    %v1443 = vld [vmem:[%s16 + $0x15c] sm:$0xf]
    %v1444 = vld [vmem:[%s16 + $0x160] sm:$0xf]
    %v1445 = vld [vmem:[%s16 + $0x164] sm:$0xf]
    %v1446 = vld [vmem:[%s16 + $0x168] sm:$0xf]
    %v1447 = vld [vmem:[%s16 + $0x16c] sm:$0xf]
    %v1448 = vld [vmem:[%s16 + $0x170] sm:$0xf]
    %v1449 = vld [vmem:[%s16 + $0x174] sm:$0xf]
    %v1450 = vld [vmem:[%s16 + $0x178] sm:$0xf]
    %v1451 = vld [vmem:[%s16 + $0x17c] sm:$0xf]
    %v1452 = vld [vmem:[%s16 + $0x180] sm:$0xf]
    %v1453 = vld [vmem:[%s16 + $0x184] sm:$0xf]
    %v1454 = vld [vmem:[%s16 + $0x188] sm:$0xf]
    %v1455 = vld [vmem:[%s16 + $0x18c] sm:$0xf]
    %v1456 = vld [vmem:[%s16 + $0x190] sm:$0xf]
    %v1457 = vld [vmem:[%s16 + $0x194] sm:$0xf]
    %v1458 = vld [vmem:[%s16 + $0x198] sm:$0xf]
    %v1459 = vld [vmem:[%s16 + $0x19c] sm:$0xf]
    %v1460 = vld [vmem:[%s16 + $0x1a0] sm:$0xf]
    %v1461 = vld [vmem:[%s16 + $0x1a4] sm:$0xf]
    %v1462 = vld [vmem:[%s16 + $0x1a8] sm:$0xf]
    %v1463 = vld [vmem:[%s16 + $0x1ac] sm:$0xf]
    %v1464 = vld [vmem:[%s16 + $0x1b0] sm:$0xf]
    %v1465 = vld [vmem:[%s16 + $0x1b4] sm:$0xf]
    %v1466 = vld [vmem:[%s16 + $0x1b8] sm:$0xf]
    %v1467 = vld [vmem:[%s16 + $0x1bc] sm:$0xf]
    %v1468 = vld [vmem:[%s16 + $0x1c0] sm:$0xf]
    %v1469 = vld [vmem:[%s16 + $0x1c4] sm:$0xf]
    %v1470 = vld [vmem:[%s16 + $0x1c8] sm:$0xf]
    %v1471 = vld [vmem:[%s16 + $0x1cc] sm:$0xf]
    %v1472 = vld [vmem:[%s16 + $0x1d0] sm:$0xf]
    %v1473 = vld [vmem:[%s16 + $0x1d4] sm:$0xf]
    %v1474 = vld [vmem:[%s16 + $0x1d8] sm:$0xf]
    %v1475 = vld [vmem:[%s16 + $0x1dc] sm:$0xf]
    %v1476 = vld [vmem:[%s16 + $0x1e0] sm:$0xf]
    %v1477 = vld [vmem:[%s16 + $0x1e4] sm:$0xf]
    %v1478 = vld [vmem:[%s16 + $0x1e8] sm:$0xf]
    %v1479 = vld [vmem:[%s16 + $0x1ec] sm:$0xf]
    %v1480 = vld [vmem:[%s16 + $0x1f0] sm:$0xf]
    %v1481 = vld [vmem:[%s16 + $0x1f4] sm:$0xf]
    %v1482 = vld [vmem:[%s16 + $0x1f8] sm:$0xf]
    %v1483 = vld [vmem:[%s16 + $0x1fc] sm:$0xf]
    %v1484 = vld [vmem:[%s16 + $0x200] sm:$0xf]
    %v1485 = vld [vmem:[%s16 + $0x204] sm:$0xf]
    %v1486 = vld [vmem:[%s16 + $0x208] sm:$0xf]
    %v1487 = vld [vmem:[%s16 + $0x20c] sm:$0xf]
    %v1488 = vld [vmem:[%s16 + $0x210] sm:$0xf]
    %v1489 = vld [vmem:[%s16 + $0x214] sm:$0xf]
    %v1490 = vld [vmem:[%s16 + $0x218] sm:$0xf]
    %v1491 = vld [vmem:[%s16 + $0x21c] sm:$0xf]
    %v1492 = vld [vmem:[%s16 + $0x220] sm:$0xf]
    %v1493 = vld [vmem:[%s16 + $0x224] sm:$0xf]
    %v1494 = vld [vmem:[%s16 + $0x228] sm:$0xf]
    %v1495 = vld [vmem:[%s16 + $0x22c] sm:$0xf]
    %v1496 = vld [vmem:[%s16 + $0x230] sm:$0xf]
    %v1497 = vld [vmem:[%s16 + $0x234] sm:$0xf]
    %v1498 = vld [vmem:[%s16 + $0x238] sm:$0xf]
    %v1499 = vld [vmem:[%s16 + $0x23c] sm:$0xf]
    %v1500 = vld [vmem:[%s16 + $0x240] sm:$0xf]
    %v1501 = vld [vmem:[%s16 + $0x244] sm:$0xf]
    %v1502 = vld [vmem:[%s16 + $0x248] sm:$0xf]
    %v1503 = vld [vmem:[%s16 + $0x24c] sm:$0xf]
    %v1504 = vld [vmem:[%s16 + $0x250] sm:$0xf]
    %v1505 = vld [vmem:[%s16 + $0x254] sm:$0xf]
    %v1506 = vld [vmem:[%s16 + $0x258] sm:$0xf]
    %v1507 = vld [vmem:[%s16 + $0x25c] sm:$0xf]
    %v1508 = vld [vmem:[%s16 + $0x260] sm:$0xf]
    %v1509 = vld [vmem:[%s16 + $0x264] sm:$0xf]
    %v1510 = vld [vmem:[%s16 + $0x268] sm:$0xf]
    %v1511 = vld [vmem:[%s16 + $0x26c] sm:$0xf]
    %v1512 = vld [vmem:[%s16 + $0x270] sm:$0xf]
    %v1513 = vld [vmem:[%s16 + $0x274] sm:$0xf]
    %v1514 = vld [vmem:[%s16 + $0x278] sm:$0xf]
    %v1515 = vld [vmem:[%s16 + $0x27c] sm:$0xf]
    %v1516 = vld [vmem:[%s16 + $0x280] sm:$0xf]
    %v1517 = vld [vmem:[%s16 + $0x284] sm:$0xf]
    %v1518 = vld [vmem:[%s16 + $0x288] sm:$0xf]
    %v1519 = vld [vmem:[%s16 + $0x28c] sm:$0xf]
    %v1520 = vld [vmem:[%s16 + $0x290] sm:$0xf]
    %v1521 = vld [vmem:[%s16 + $0x294] sm:$0xf]
    %v1522 = vld [vmem:[%s16 + $0x298] sm:$0xf]
    %v1523 = vld [vmem:[%s16 + $0x29c] sm:$0xf]
    %v1524 = vld [vmem:[%s16 + $0x2a0] sm:$0xf]
    %v1525 = vld [vmem:[%s16 + $0x2a4] sm:$0xf]
    %v1526 = vld [vmem:[%s16 + $0x2a8] sm:$0xf]
    %v1527 = vld [vmem:[%s16 + $0x2ac] sm:$0xf]
    %v1528 = vld [vmem:[%s16 + $0x2b0] sm:$0xf]
    %v1529 = vld [vmem:[%s16 + $0x2b4] sm:$0xf]
    %v1530 = vld [vmem:[%s16 + $0x2b8] sm:$0xf]
    %v1531 = vld [vmem:[%s16 + $0x2bc] sm:$0xf]
    %v1532 = vld [vmem:[%s16 + $0x2c0] sm:$0xf]
    %v1533 = vld [vmem:[%s16 + $0x2c4] sm:$0xf]
    %v1534 = vld [vmem:[%s16 + $0x2c8] sm:$0xf]
    %v1535 = vld [vmem:[%s16 + $0x2cc] sm:$0xf]
    %v1536 = vld [vmem:[%s16 + $0x2d0] sm:$0xf]
    %v1537 = vld [vmem:[%s16 + $0x2d4] sm:$0xf]
    %v1538 = vld [vmem:[%s16 + $0x2d8] sm:$0xf]
    %v1539 = vld [vmem:[%s16 + $0x2dc] sm:$0xf]
    %v1540 = vld [vmem:[%s16 + $0x2e0] sm:$0xf]
    %v1541 = vld [vmem:[%s16 + $0x2e4] sm:$0xf]
    %v1542 = vld [vmem:[%s16 + $0x2e8] sm:$0xf]
    %v1543 = vld [vmem:[%s16 + $0x2ec] sm:$0xf]
    %v1544 = vld [vmem:[%s16 + $0x2f0] sm:$0xf]
    %v1545 = vld [vmem:[%s16 + $0x2f4] sm:$0xf]
    %v1546 = vld [vmem:[%s16 + $0x2f8] sm:$0xf]
    %v1547 = vld [vmem:[%s16 + $0x2fc] sm:$0xf]
    %v1548 = vld [vmem:[%s16 + $0x300] sm:$0xf]
    %v1549 = vld [vmem:[%s16 + $0x304] sm:$0xf]
    %v1550 = vld [vmem:[%s16 + $0x308] sm:$0xf]
    %v1551 = vld [vmem:[%s16 + $0x30c] sm:$0xf]
    %v1552 = vld [vmem:[%s16 + $0x310] sm:$0xf]
    %v1553 = vld [vmem:[%s16 + $0x314] sm:$0xf]
    %v1554 = vld [vmem:[%s16 + $0x318] sm:$0xf]
    %v1555 = vld [vmem:[%s16 + $0x31c] sm:$0xf]
    %v1556 = vld [vmem:[%s16 + $0x320] sm:$0xf]
    %v1557 = vld [vmem:[%s16 + $0x324] sm:$0xf]
    %v1558 = vld [vmem:[%s16 + $0x328] sm:$0xf]
    %v1559 = vld [vmem:[%s16 + $0x32c] sm:$0xf]
    %v1560 = vld [vmem:[%s16 + $0x330] sm:$0xf]
    %v1561 = vld [vmem:[%s16 + $0x334] sm:$0xf]
    %v1562 = vld [vmem:[%s16 + $0x338] sm:$0xf]
    %v1563 = vld [vmem:[%s16 + $0x33c] sm:$0xf]
    %v1564 = vld [vmem:[%s16 + $0x340] sm:$0xf]
    %v1565 = vld [vmem:[%s16 + $0x344] sm:$0xf]
    %v1566 = vld [vmem:[%s16 + $0x348] sm:$0xf]
    %v1567 = vld [vmem:[%s16 + $0x34c] sm:$0xf]
    %v1568 = vld [vmem:[%s16 + $0x350] sm:$0xf]
    %v1569 = vld [vmem:[%s16 + $0x354] sm:$0xf]
    %v1570 = vld [vmem:[%s16 + $0x358] sm:$0xf]
    %v1571 = vld [vmem:[%s16 + $0x35c] sm:$0xf]
    %v1572 = vld [vmem:[%s16 + $0x360] sm:$0xf]
    %v1573 = vld [vmem:[%s16 + $0x364] sm:$0xf]
    %v1574 = vld [vmem:[%s16 + $0x368] sm:$0xf]
    %v1575 = vld [vmem:[%s16 + $0x36c] sm:$0xf]
    %v1576 = vld [vmem:[%s16 + $0x370] sm:$0xf]
    %v1577 = vld [vmem:[%s16 + $0x374] sm:$0xf]
    %v1578 = vld [vmem:[%s16 + $0x378] sm:$0xf]
    %v1579 = vld [vmem:[%s16 + $0x37c] sm:$0xf]
    %v1580 = vld [vmem:[%s16 + $0x380] sm:$0xf]
    %v1581 = vld [vmem:[%s16 + $0x384] sm:$0xf]
    %v1582 = vld [vmem:[%s16 + $0x388] sm:$0xf]
    %v1583 = vld [vmem:[%s16 + $0x38c] sm:$0xf]
    %v1584 = vld [vmem:[%s16 + $0x390] sm:$0xf]
    %v1585 = vld [vmem:[%s16 + $0x394] sm:$0xf]
    %v1586 = vld [vmem:[%s16 + $0x398] sm:$0xf]
    %v1587 = vld [vmem:[%s16 + $0x39c] sm:$0xf]
    %v1588 = vld [vmem:[%s16 + $0x3a0] sm:$0xf]
    %v1589 = vld [vmem:[%s16 + $0x3a4] sm:$0xf]
    %v1590 = vld [vmem:[%s16 + $0x3a8] sm:$0xf]
    %v1591 = vld [vmem:[%s16 + $0x3ac] sm:$0xf]
    %v1592 = vld [vmem:[%s16 + $0x3b0] sm:$0xf]
    %v1593 = vld [vmem:[%s16 + $0x3b4] sm:$0xf]
    %v1594 = vld [vmem:[%s16 + $0x3b8] sm:$0xf]
    %v1595 = vld [vmem:[%s16 + $0x3bc] sm:$0xf]
    %v1596 = vld [vmem:[%s16 + $0x3c0] sm:$0xf]
    %v1597 = vld [vmem:[%s16 + $0x3c4] sm:$0xf]
    %v1598 = vld [vmem:[%s16 + $0x3c8] sm:$0xf]
    %v1599 = vld [vmem:[%s16 + $0x3cc] sm:$0xf]
    %v1600 = vld [vmem:[%s16 + $0x3d0] sm:$0xf]
    %v1601 = vld [vmem:[%s16 + $0x3d4] sm:$0xf]
    %v1602 = vld [vmem:[%s16 + $0x3d8] sm:$0xf]
    %v1603 = vld [vmem:[%s16 + $0x3dc] sm:$0xf]
    %v1604 = vld [vmem:[%s16 + $0x3e0] sm:$0xf]
    %v1605 = vld [vmem:[%s16 + $0x3e4] sm:$0xf]
    %v1606 = vld [vmem:[%s16 + $0x3e8] sm:$0xf]
    %v1607 = vld [vmem:[%s16 + $0x3ec] sm:$0xf]
    %v1608 = vld [vmem:[%s16 + $0x3f0] sm:$0xf]
    %v1609 = vld [vmem:[%s16 + $0x3f4] sm:$0xf]
    %v1610 = vld [vmem:[%s16 + $0x3f8] sm:$0xf]
    %v1611 = vld [vmem:[%s16 + $0x3fc] sm:$0xf]
    %v1612 = vld [vmem:[%s17] sm:$0x1]
    %v1614 = vlaneseq
    %v1615 = vshrl.u32 %v1614, 7
    %v1616 = vsub.s32 0, %v1615
    %v1617 = vrot.slane %v1612, %v1616
    %v1875 = vunpack.c.l.b16 %v1356
    %v1876 = vunpack.c.l.b16 %v1357
    %v1877 = vunpack.c.l.b16 %v1358
    %v1878 = vunpack.c.l.b16 %v1359
    %v1879 = vunpack.c.l.b16 %v1360
    %v1880 = vunpack.c.l.b16 %v1361
    %v1881 = vunpack.c.l.b16 %v1362
    %v1882 = vunpack.c.l.b16 %v1363
    %v1883 = vunpack.c.l.b16 %v1364
    %v1884 = vunpack.c.l.b16 %v1365
    %v1885 = vunpack.c.l.b16 %v1366
    %v1886 = vunpack.c.l.b16 %v1367
    %v1887 = vunpack.c.l.b16 %v1368
    %v1888 = vunpack.c.l.b16 %v1369
    %v1889 = vunpack.c.l.b16 %v1370
    %v1890 = vunpack.c.l.b16 %v1371
    %v1891 = vunpack.c.l.b16 %v1372
    %v1892 = vunpack.c.l.b16 %v1373
    %v1893 = vunpack.c.l.b16 %v1374
    %v1894 = vunpack.c.l.b16 %v1375
    %v1895 = vunpack.c.l.b16 %v1376
    %v1896 = vunpack.c.l.b16 %v1377
    %v1897 = vunpack.c.l.b16 %v1378
    %v1898 = vunpack.c.l.b16 %v1379
    %v1899 = vunpack.c.l.b16 %v1380
    %v1900 = vunpack.c.l.b16 %v1381
    %v1901 = vunpack.c.l.b16 %v1382
    %v1902 = vunpack.c.l.b16 %v1383
    %v1903 = vunpack.c.l.b16 %v1384
    %v1904 = vunpack.c.l.b16 %v1385
    %v1905 = vunpack.c.l.b16 %v1386
    %v1906 = vunpack.c.l.b16 %v1387
    %v1907 = vunpack.c.l.b16 %v1388
    %v1908 = vunpack.c.l.b16 %v1389
    %v1909 = vunpack.c.l.b16 %v1390
    %v1910 = vunpack.c.l.b16 %v1391
    %v1911 = vunpack.c.l.b16 %v1392
    %v1912 = vunpack.c.l.b16 %v1393
    %v1913 = vunpack.c.l.b16 %v1394
    %v1914 = vunpack.c.l.b16 %v1395
    %v1915 = vunpack.c.l.b16 %v1396
    %v1916 = vunpack.c.l.b16 %v1397
    %v1917 = vunpack.c.l.b16 %v1398
    %v1918 = vunpack.c.l.b16 %v1399
    %v1919 = vunpack.c.l.b16 %v1400
    %v1920 = vunpack.c.l.b16 %v1401
    %v1921 = vunpack.c.l.b16 %v1402
    %v1922 = vunpack.c.l.b16 %v1403
    %v1923 = vunpack.c.l.b16 %v1404
    %v1924 = vunpack.c.l.b16 %v1405
    %v1925 = vunpack.c.l.b16 %v1406
    %v1926 = vunpack.c.l.b16 %v1407
    %v1927 = vunpack.c.l.b16 %v1408
    %v1928 = vunpack.c.l.b16 %v1409
    %v1929 = vunpack.c.l.b16 %v1410
    %v1930 = vunpack.c.l.b16 %v1411
    %v1931 = vunpack.c.l.b16 %v1412
    %v1932 = vunpack.c.l.b16 %v1413
    %v1933 = vunpack.c.l.b16 %v1414
    %v1934 = vunpack.c.l.b16 %v1415
    %v1935 = vunpack.c.l.b16 %v1416
    %v1936 = vunpack.c.l.b16 %v1417
    %v1937 = vunpack.c.l.b16 %v1418
    %v1938 = vunpack.c.l.b16 %v1419
    %v1939 = vunpack.c.l.b16 %v1420
    %v1940 = vunpack.c.l.b16 %v1421
    %v1941 = vunpack.c.l.b16 %v1422
    %v1942 = vunpack.c.l.b16 %v1423
    %v1943 = vunpack.c.l.b16 %v1424
    %v1944 = vunpack.c.l.b16 %v1425
    %v1945 = vunpack.c.l.b16 %v1426
    %v1946 = vunpack.c.l.b16 %v1427
    %v1947 = vunpack.c.l.b16 %v1428
    %v1948 = vunpack.c.l.b16 %v1429
    %v1949 = vunpack.c.l.b16 %v1430
    %v1950 = vunpack.c.l.b16 %v1431
    %v1951 = vunpack.c.l.b16 %v1432
    %v1952 = vunpack.c.l.b16 %v1433
    %v1953 = vunpack.c.l.b16 %v1434
    %v1954 = vunpack.c.l.b16 %v1435
    %v1955 = vunpack.c.l.b16 %v1436
    %v1956 = vunpack.c.l.b16 %v1437
    %v1957 = vunpack.c.l.b16 %v1438
    %v1958 = vunpack.c.l.b16 %v1439
    %v1959 = vunpack.c.l.b16 %v1440
    %v1960 = vunpack.c.l.b16 %v1441
    %v1961 = vunpack.c.l.b16 %v1442
    %v1962 = vunpack.c.l.b16 %v1443
    %v1963 = vunpack.c.l.b16 %v1444
    %v1964 = vunpack.c.l.b16 %v1445
    %v1965 = vunpack.c.l.b16 %v1446
    %v1966 = vunpack.c.l.b16 %v1447
    %v1967 = vunpack.c.l.b16 %v1448
    %v1968 = vunpack.c.l.b16 %v1449
    %v1969 = vunpack.c.l.b16 %v1450
    %v1970 = vunpack.c.l.b16 %v1451
    %v1971 = vunpack.c.l.b16 %v1452
    %v1972 = vunpack.c.l.b16 %v1453
    %v1973 = vunpack.c.l.b16 %v1454
    %v1974 = vunpack.c.l.b16 %v1455
    %v1975 = vunpack.c.l.b16 %v1456
    %v1976 = vunpack.c.l.b16 %v1457
    %v1977 = vunpack.c.l.b16 %v1458
    %v1978 = vunpack.c.l.b16 %v1459
    %v1979 = vunpack.c.l.b16 %v1460
    %v1980 = vunpack.c.l.b16 %v1461
    %v1981 = vunpack.c.l.b16 %v1462
    %v1982 = vunpack.c.l.b16 %v1463
    %v1983 = vunpack.c.l.b16 %v1464
    %v1984 = vunpack.c.l.b16 %v1465
    %v1985 = vunpack.c.l.b16 %v1466
    %v1986 = vunpack.c.l.b16 %v1467
    %v1987 = vunpack.c.l.b16 %v1468
    %v1988 = vunpack.c.l.b16 %v1469
    %v1989 = vunpack.c.l.b16 %v1470
    %v1990 = vunpack.c.l.b16 %v1471
    %v1991 = vunpack.c.l.b16 %v1472
    %v1992 = vunpack.c.l.b16 %v1473
    %v1993 = vunpack.c.l.b16 %v1474
    %v1994 = vunpack.c.l.b16 %v1475
    %v1995 = vunpack.c.l.b16 %v1476
    %v1996 = vunpack.c.l.b16 %v1477
    %v1997 = vunpack.c.l.b16 %v1478
    %v1998 = vunpack.c.l.b16 %v1479
    %v1999 = vunpack.c.l.b16 %v1480
    %v2000 = vunpack.c.l.b16 %v1481
    %v2001 = vunpack.c.l.b16 %v1482
    %v2002 = vunpack.c.l.b16 %v1483
    %v2003 = vunpack.c.l.b16 %v1484
    %v2004 = vunpack.c.l.b16 %v1485
    %v2005 = vunpack.c.l.b16 %v1486
    %v2006 = vunpack.c.l.b16 %v1487
    %v2007 = vunpack.c.l.b16 %v1488
    %v2008 = vunpack.c.l.b16 %v1489
    %v2009 = vunpack.c.l.b16 %v1490
    %v2010 = vunpack.c.l.b16 %v1491
    %v2011 = vunpack.c.l.b16 %v1492
    %v2012 = vunpack.c.l.b16 %v1493
    %v2013 = vunpack.c.l.b16 %v1494
    %v2014 = vunpack.c.l.b16 %v1495
    %v2015 = vunpack.c.l.b16 %v1496
    %v2016 = vunpack.c.l.b16 %v1497
    %v2017 = vunpack.c.l.b16 %v1498
    %v2018 = vunpack.c.l.b16 %v1499
    %v2019 = vunpack.c.l.b16 %v1500
    %v2020 = vunpack.c.l.b16 %v1501
    %v2021 = vunpack.c.l.b16 %v1502
    %v2022 = vunpack.c.l.b16 %v1503
    %v2023 = vunpack.c.l.b16 %v1504
    %v2024 = vunpack.c.l.b16 %v1505
    %v2025 = vunpack.c.l.b16 %v1506
    %v2026 = vunpack.c.l.b16 %v1507
    %v2027 = vunpack.c.l.b16 %v1508
    %v2028 = vunpack.c.l.b16 %v1509
    %v2029 = vunpack.c.l.b16 %v1510
    %v2030 = vunpack.c.l.b16 %v1511
    %v2031 = vunpack.c.l.b16 %v1512
    %v2032 = vunpack.c.l.b16 %v1513
    %v2033 = vunpack.c.l.b16 %v1514
    %v2034 = vunpack.c.l.b16 %v1515
    %v2035 = vunpack.c.l.b16 %v1516
    %v2036 = vunpack.c.l.b16 %v1517
    %v2037 = vunpack.c.l.b16 %v1518
    %v2038 = vunpack.c.l.b16 %v1519
    %v2039 = vunpack.c.l.b16 %v1520
    %v2040 = vunpack.c.l.b16 %v1521
    %v2041 = vunpack.c.l.b16 %v1522
    %v2042 = vunpack.c.l.b16 %v1523
    %v2043 = vunpack.c.l.b16 %v1524
    %v2044 = vunpack.c.l.b16 %v1525
    %v2045 = vunpack.c.l.b16 %v1526
    %v2046 = vunpack.c.l.b16 %v1527
    %v2047 = vunpack.c.l.b16 %v1528
    %v2048 = vunpack.c.l.b16 %v1529
    %v2049 = vunpack.c.l.b16 %v1530
    %v2050 = vunpack.c.l.b16 %v1531
    %v2051 = vunpack.c.l.b16 %v1532
    %v2052 = vunpack.c.l.b16 %v1533
    %v2053 = vunpack.c.l.b16 %v1534
    %v2054 = vunpack.c.l.b16 %v1535
    %v2055 = vunpack.c.l.b16 %v1536
    %v2056 = vunpack.c.l.b16 %v1537
    %v2057 = vunpack.c.l.b16 %v1538
    %v2058 = vunpack.c.l.b16 %v1539
    %v2059 = vunpack.c.l.b16 %v1540
    %v2060 = vunpack.c.l.b16 %v1541
    %v2061 = vunpack.c.l.b16 %v1542
    %v2062 = vunpack.c.l.b16 %v1543
    %v2063 = vunpack.c.l.b16 %v1544
    %v2064 = vunpack.c.l.b16 %v1545
    %v2065 = vunpack.c.l.b16 %v1546
    %v2066 = vunpack.c.l.b16 %v1547
    %v2067 = vunpack.c.l.b16 %v1548
    %v2068 = vunpack.c.l.b16 %v1549
    %v2069 = vunpack.c.l.b16 %v1550
    %v2070 = vunpack.c.l.b16 %v1551
    %v2071 = vunpack.c.l.b16 %v1552
    %v2072 = vunpack.c.l.b16 %v1553
    %v2073 = vunpack.c.l.b16 %v1554
    %v2074 = vunpack.c.l.b16 %v1555
    %v2075 = vunpack.c.l.b16 %v1556
    %v2076 = vunpack.c.l.b16 %v1557
    %v2077 = vunpack.c.l.b16 %v1558
    %v2078 = vunpack.c.l.b16 %v1559
    %v2079 = vunpack.c.l.b16 %v1560
    %v2080 = vunpack.c.l.b16 %v1561
    %v2081 = vunpack.c.l.b16 %v1562
    %v2082 = vunpack.c.l.b16 %v1563
    %v2083 = vunpack.c.l.b16 %v1564
    %v2084 = vunpack.c.l.b16 %v1565
    %v2085 = vunpack.c.l.b16 %v1566
    %v2086 = vunpack.c.l.b16 %v1567
    %v2087 = vunpack.c.l.b16 %v1568
    %v2088 = vunpack.c.l.b16 %v1569
    %v2089 = vunpack.c.l.b16 %v1570
    %v2090 = vunpack.c.l.b16 %v1571
    %v2091 = vunpack.c.l.b16 %v1572
    %v2092 = vunpack.c.l.b16 %v1573
    %v2093 = vunpack.c.l.b16 %v1574
    %v2094 = vunpack.c.l.b16 %v1575
    %v2095 = vunpack.c.l.b16 %v1576
    %v2096 = vunpack.c.l.b16 %v1577
    %v2097 = vunpack.c.l.b16 %v1578
    %v2098 = vunpack.c.l.b16 %v1579
    %v2099 = vunpack.c.l.b16 %v1580
    %v2100 = vunpack.c.l.b16 %v1581
    %v2101 = vunpack.c.l.b16 %v1582
    %v2102 = vunpack.c.l.b16 %v1583
    %v2103 = vunpack.c.l.b16 %v1584
    %v2104 = vunpack.c.l.b16 %v1585
    %v2105 = vunpack.c.l.b16 %v1586
    %v2106 = vunpack.c.l.b16 %v1587
    %v2107 = vunpack.c.l.b16 %v1588
    %v2108 = vunpack.c.l.b16 %v1589
    %v2109 = vunpack.c.l.b16 %v1590
    %v2110 = vunpack.c.l.b16 %v1591
    %v2111 = vunpack.c.l.b16 %v1592
    %v2112 = vunpack.c.l.b16 %v1593
    %v2113 = vunpack.c.l.b16 %v1594
    %v2114 = vunpack.c.l.b16 %v1595
    %v2115 = vunpack.c.l.b16 %v1596
    %v2116 = vunpack.c.l.b16 %v1597
    %v2117 = vunpack.c.l.b16 %v1598
    %v2118 = vunpack.c.l.b16 %v1599
    %v2119 = vunpack.c.l.b16 %v1600
    %v2120 = vunpack.c.l.b16 %v1601
    %v2121 = vunpack.c.l.b16 %v1602
    %v2122 = vunpack.c.l.b16 %v1603
    %v2123 = vunpack.c.l.b16 %v1604
    %v2124 = vunpack.c.l.b16 %v1605
    %v2125 = vunpack.c.l.b16 %v1606
    %v2126 = vunpack.c.l.b16 %v1607
    %v2127 = vunpack.c.l.b16 %v1608
    %v2128 = vunpack.c.l.b16 %v1609
    %v2129 = vunpack.c.l.b16 %v1610
    %v2130 = vunpack.c.l.b16 %v1611
    %v2131 = vpack.c.b16 %v1876, %v1875
    %v2132 = vpack.c.b16 %v1878, %v1877
    %v2133 = vpack.c.b16 %v1880, %v1879
    %v2134 = vpack.c.b16 %v1882, %v1881
    %v2135 = vpack.c.b16 %v1884, %v1883
    %v2136 = vpack.c.b16 %v1886, %v1885
    %v2137 = vpack.c.b16 %v1888, %v1887
    %v2138 = vpack.c.b16 %v1890, %v1889
    %v2139 = vpack.c.b16 %v1892, %v1891
    %v2140 = vpack.c.b16 %v1894, %v1893
    %v2141 = vpack.c.b16 %v1896, %v1895
    %v2142 = vpack.c.b16 %v1898, %v1897
    %v2143 = vpack.c.b16 %v1900, %v1899
    %v2144 = vpack.c.b16 %v1902, %v1901
    %v2145 = vpack.c.b16 %v1904, %v1903
    %v2146 = vpack.c.b16 %v1906, %v1905
    %v2147 = vpack.c.b16 %v1908, %v1907
    %v2148 = vpack.c.b16 %v1910, %v1909
    %v2149 = vpack.c.b16 %v1912, %v1911
    %v2150 = vpack.c.b16 %v1914, %v1913
    %v2151 = vpack.c.b16 %v1916, %v1915
    %v2152 = vpack.c.b16 %v1918, %v1917
    %v2153 = vpack.c.b16 %v1920, %v1919
    %v2154 = vpack.c.b16 %v1922, %v1921
    %v2155 = vpack.c.b16 %v1924, %v1923
    %v2156 = vpack.c.b16 %v1926, %v1925
    %v2157 = vpack.c.b16 %v1928, %v1927
    %v2158 = vpack.c.b16 %v1930, %v1929
    %v2159 = vpack.c.b16 %v1932, %v1931
    %v2160 = vpack.c.b16 %v1934, %v1933
    %v2161 = vpack.c.b16 %v1936, %v1935
    %v2162 = vpack.c.b16 %v1938, %v1937
    %v2163 = vpack.c.b16 %v1940, %v1939
    %v2164 = vpack.c.b16 %v1942, %v1941
    %v2165 = vpack.c.b16 %v1944, %v1943
    %v2166 = vpack.c.b16 %v1946, %v1945
    %v2167 = vpack.c.b16 %v1948, %v1947
    %v2168 = vpack.c.b16 %v1950, %v1949
    %v2169 = vpack.c.b16 %v1952, %v1951
    %v2170 = vpack.c.b16 %v1954, %v1953
    %v2171 = vpack.c.b16 %v1956, %v1955
    %v2172 = vpack.c.b16 %v1958, %v1957
    %v2173 = vpack.c.b16 %v1960, %v1959
    %v2174 = vpack.c.b16 %v1962, %v1961
    %v2175 = vpack.c.b16 %v1964, %v1963
    %v2176 = vpack.c.b16 %v1966, %v1965
    %v2177 = vpack.c.b16 %v1968, %v1967
    %v2178 = vpack.c.b16 %v1970, %v1969
    %v2179 = vpack.c.b16 %v1972, %v1971
    %v2180 = vpack.c.b16 %v1974, %v1973
    %v2181 = vpack.c.b16 %v1976, %v1975
    %v2182 = vpack.c.b16 %v1978, %v1977
    %v2183 = vpack.c.b16 %v1980, %v1979
    %v2184 = vpack.c.b16 %v1982, %v1981
    %v2185 = vpack.c.b16 %v1984, %v1983
    %v2186 = vpack.c.b16 %v1986, %v1985
    %v2187 = vpack.c.b16 %v1988, %v1987
    %v2188 = vpack.c.b16 %v1990, %v1989
    %v2189 = vpack.c.b16 %v1992, %v1991
    %v2190 = vpack.c.b16 %v1994, %v1993
    %v2191 = vpack.c.b16 %v1996, %v1995
    %v2192 = vpack.c.b16 %v1998, %v1997
    %v2193 = vpack.c.b16 %v2000, %v1999
    %v2194 = vpack.c.b16 %v2002, %v2001
    %v2195 = vpack.c.b16 %v2004, %v2003
    %v2196 = vpack.c.b16 %v2006, %v2005
    %v2197 = vpack.c.b16 %v2008, %v2007
    %v2198 = vpack.c.b16 %v2010, %v2009
    %v2199 = vpack.c.b16 %v2012, %v2011
    %v2200 = vpack.c.b16 %v2014, %v2013
    %v2201 = vpack.c.b16 %v2016, %v2015
    %v2202 = vpack.c.b16 %v2018, %v2017
    %v2203 = vpack.c.b16 %v2020, %v2019
    %v2204 = vpack.c.b16 %v2022, %v2021
    %v2205 = vpack.c.b16 %v2024, %v2023
    %v2206 = vpack.c.b16 %v2026, %v2025
    %v2207 = vpack.c.b16 %v2028, %v2027
    %v2208 = vpack.c.b16 %v2030, %v2029
    %v2209 = vpack.c.b16 %v2032, %v2031
    %v2210 = vpack.c.b16 %v2034, %v2033
    %v2211 = vpack.c.b16 %v2036, %v2035
    %v2212 = vpack.c.b16 %v2038, %v2037
    %v2213 = vpack.c.b16 %v2040, %v2039
    %v2214 = vpack.c.b16 %v2042, %v2041
    %v2215 = vpack.c.b16 %v2044, %v2043
    %v2216 = vpack.c.b16 %v2046, %v2045
    %v2217 = vpack.c.b16 %v2048, %v2047
    %v2218 = vpack.c.b16 %v2050, %v2049
    %v2219 = vpack.c.b16 %v2052, %v2051
    %v2220 = vpack.c.b16 %v2054, %v2053
    %v2221 = vpack.c.b16 %v2056, %v2055
    %v2222 = vpack.c.b16 %v2058, %v2057
    %v2223 = vpack.c.b16 %v2060, %v2059
    %v2224 = vpack.c.b16 %v2062, %v2061
    %v2225 = vpack.c.b16 %v2064, %v2063
    %v2226 = vpack.c.b16 %v2066, %v2065
    %v2227 = vpack.c.b16 %v2068, %v2067
    %v2228 = vpack.c.b16 %v2070, %v2069
    %v2229 = vpack.c.b16 %v2072, %v2071
    %v2230 = vpack.c.b16 %v2074, %v2073
    %v2231 = vpack.c.b16 %v2076, %v2075
    %v2232 = vpack.c.b16 %v2078, %v2077
    %v2233 = vpack.c.b16 %v2080, %v2079
    %v2234 = vpack.c.b16 %v2082, %v2081
    %v2235 = vpack.c.b16 %v2084, %v2083
    %v2236 = vpack.c.b16 %v2086, %v2085
    %v2237 = vpack.c.b16 %v2088, %v2087
    %v2238 = vpack.c.b16 %v2090, %v2089
    %v2239 = vpack.c.b16 %v2092, %v2091
    %v2240 = vpack.c.b16 %v2094, %v2093
    %v2241 = vpack.c.b16 %v2096, %v2095
    %v2242 = vpack.c.b16 %v2098, %v2097
    %v2243 = vpack.c.b16 %v2100, %v2099
    %v2244 = vpack.c.b16 %v2102, %v2101
    %v2245 = vpack.c.b16 %v2104, %v2103
    %v2246 = vpack.c.b16 %v2106, %v2105
    %v2247 = vpack.c.b16 %v2108, %v2107
    %v2248 = vpack.c.b16 %v2110, %v2109
    %v2249 = vpack.c.b16 %v2112, %v2111
    %v2250 = vpack.c.b16 %v2114, %v2113
    %v2251 = vpack.c.b16 %v2116, %v2115
    %v2252 = vpack.c.b16 %v2118, %v2117
    %v2253 = vpack.c.b16 %v2120, %v2119
    %v2254 = vpack.c.b16 %v2122, %v2121
    %v2255 = vpack.c.b16 %v2124, %v2123
    %v2256 = vpack.c.b16 %v2126, %v2125
    %v2257 = vpack.c.b16 %v2128, %v2127
    %v2258 = vpack.c.b16 %v2130, %v2129
    %2387 = vmatprep.subr.bf16.mxu0 0
    %2388 = vmatpush1.bf16.msra.mxu0 %v2131
    %2389 = vmatprep.subr.bf16.mxu0 0
    %2390 = vmatpush1.bf16.msra.mxu0 %v2132
    %2391 = vmatprep.subr.bf16.mxu0 0
    %2392 = vmatpush1.bf16.msra.mxu0 %v2133
    %2393 = vmatprep.subr.bf16.mxu0 0
    %2394 = vmatpush1.bf16.msra.mxu0 %v2134
    %2395 = vmatprep.subr.bf16.mxu0 0
    %2396 = vmatpush1.bf16.msra.mxu0 %v2135
    %2397 = vmatprep.subr.bf16.mxu0 0
    %2398 = vmatpush1.bf16.msra.mxu0 %v2136
    %2399 = vmatprep.subr.bf16.mxu0 0
    %2400 = vmatpush1.bf16.msra.mxu0 %v2137
    %2401 = vmatprep.subr.bf16.mxu0 0
    %2402 = vmatpush1.bf16.msra.mxu0 %v2138
    %2403 = vmatprep.subr.bf16.mxu0 0
    %2404 = vmatpush1.bf16.msra.mxu0 %v2139
    %2405 = vmatprep.subr.bf16.mxu0 0
    %2406 = vmatpush1.bf16.msra.mxu0 %v2140
    %2407 = vmatprep.subr.bf16.mxu0 0
    %2408 = vmatpush1.bf16.msra.mxu0 %v2141
    %2409 = vmatprep.subr.bf16.mxu0 0
    %2410 = vmatpush1.bf16.msra.mxu0 %v2142
    %2411 = vmatprep.subr.bf16.mxu0 0
    %2412 = vmatpush1.bf16.msra.mxu0 %v2143
    %2413 = vmatprep.subr.bf16.mxu0 0
    %2414 = vmatpush1.bf16.msra.mxu0 %v2144
    %2415 = vmatprep.subr.bf16.mxu0 0
    %2416 = vmatpush1.bf16.msra.mxu0 %v2145
    %2417 = vmatprep.subr.bf16.mxu0 0
    %2418 = vmatpush1.bf16.msra.mxu0 %v2146
    %2419 = vmatprep.mubr.bf16.mxu0 %v1341
    %2420 = vmatmul.mubr.bf16.gmra.mrb[0].mxu0 %v1340
    %v2421 = vpop.f32.mrb[0].mxu0
    %v2422 = vadd.f32 %v1617, %v2421
    %v2423 = vpop.f32.mrb[0].mxu0
    %v2424 = vpop.f32.mrb[0].mxu0
    %v2425 = vpop.f32.mrb[0].mxu0
    %2426 = vdwg.mxu0
    %2427 = vmatprep.subr.bf16.mxu0 0
    %2428 = vmatpush1.bf16.msra.mxu0 %v2147
    %2429 = vmatprep.subr.bf16.mxu0 0
    %2430 = vmatpush1.bf16.msra.mxu0 %v2148
    %2431 = vmatprep.subr.bf16.mxu0 0
    %2432 = vmatpush1.bf16.msra.mxu0 %v2149
    %2433 = vmatprep.subr.bf16.mxu0 0
    %2434 = vmatpush1.bf16.msra.mxu0 %v2150
    %2435 = vmatprep.subr.bf16.mxu0 0
    %2436 = vmatpush1.bf16.msra.mxu0 %v2151
    %2437 = vmatprep.subr.bf16.mxu0 0
    %2438 = vmatpush1.bf16.msra.mxu0 %v2152
    %2439 = vmatprep.subr.bf16.mxu0 0
    %2440 = vmatpush1.bf16.msra.mxu0 %v2153
    %2441 = vmatprep.subr.bf16.mxu0 0
    %2442 = vmatpush1.bf16.msra.mxu0 %v2154
    %2443 = vmatprep.subr.bf16.mxu0 0
    %2444 = vmatpush1.bf16.msra.mxu0 %v2155
    %2445 = vmatprep.subr.bf16.mxu0 0
    %2446 = vmatpush1.bf16.msra.mxu0 %v2156
    %2447 = vmatprep.subr.bf16.mxu0 0
    %2448 = vmatpush1.bf16.msra.mxu0 %v2157
    %2449 = vmatprep.subr.bf16.mxu0 0
    %2450 = vmatpush1.bf16.msra.mxu0 %v2158
    %2451 = vmatprep.subr.bf16.mxu0 0
    %2452 = vmatpush1.bf16.msra.mxu0 %v2159
    %2453 = vmatprep.subr.bf16.mxu0 0
    %2454 = vmatpush1.bf16.msra.mxu0 %v2160
    %2455 = vmatprep.subr.bf16.mxu0 0
    %2456 = vmatpush1.bf16.msra.mxu0 %v2161
    %2457 = vmatprep.subr.bf16.mxu0 0
    %2458 = vmatpush1.bf16.msra.mxu0 %v2162
    %2459 = vmatprep.mubr.bf16.mxu0 %v1343
    %2460 = vmatmul.mubr.bf16.gmra.mrb[0].mxu0 %v1342
    %v2461 = vpop.f32.mrb[0].mxu0
    %v2462 = vadd.f32 %v2422, %v2461
    %v2463 = vpop.f32.mrb[0].mxu0
    %v2464 = vpop.f32.mrb[0].mxu0
    %v2465 = vpop.f32.mrb[0].mxu0
    %2466 = vdwg.mxu0
    %2467 = vmatprep.subr.bf16.mxu0 0
    %2468 = vmatpush1.bf16.msra.mxu0 %v2163
    %2469 = vmatprep.subr.bf16.mxu0 0
    %2470 = vmatpush1.bf16.msra.mxu0 %v2164
    %2471 = vmatprep.subr.bf16.mxu0 0
    %2472 = vmatpush1.bf16.msra.mxu0 %v2165
    %2473 = vmatprep.subr.bf16.mxu0 0
    %2474 = vmatpush1.bf16.msra.mxu0 %v2166
    %2475 = vmatprep.subr.bf16.mxu0 0
    %2476 = vmatpush1.bf16.msra.mxu0 %v2167
    %2477 = vmatprep.subr.bf16.mxu0 0
    %2478 = vmatpush1.bf16.msra.mxu0 %v2168
    %2479 = vmatprep.subr.bf16.mxu0 0
    %2480 = vmatpush1.bf16.msra.mxu0 %v2169
    %2481 = vmatprep.subr.bf16.mxu0 0
    %2482 = vmatpush1.bf16.msra.mxu0 %v2170
    %2483 = vmatprep.subr.bf16.mxu0 0
    %2484 = vmatpush1.bf16.msra.mxu0 %v2171
    %2485 = vmatprep.subr.bf16.mxu0 0
    %2486 = vmatpush1.bf16.msra.mxu0 %v2172
    %2487 = vmatprep.subr.bf16.mxu0 0
    %2488 = vmatpush1.bf16.msra.mxu0 %v2173
    %2489 = vmatprep.subr.bf16.mxu0 0
    %2490 = vmatpush1.bf16.msra.mxu0 %v2174
    %2491 = vmatprep.subr.bf16.mxu0 0
    %2492 = vmatpush1.bf16.msra.mxu0 %v2175
    %2493 = vmatprep.subr.bf16.mxu0 0
    %2494 = vmatpush1.bf16.msra.mxu0 %v2176
    %2495 = vmatprep.subr.bf16.mxu0 0
    %2496 = vmatpush1.bf16.msra.mxu0 %v2177
    %2497 = vmatprep.subr.bf16.mxu0 0
    %2498 = vmatpush1.bf16.msra.mxu0 %v2178
    %2499 = vmatprep.mubr.bf16.mxu0 %v1345
    %2500 = vmatmul.mubr.bf16.gmra.mrb[0].mxu0 %v1344
    %v2501 = vpop.f32.mrb[0].mxu0
    %v2502 = vadd.f32 %v2462, %v2501
    %v2503 = vpop.f32.mrb[0].mxu0
    %v2504 = vpop.f32.mrb[0].mxu0
    %v2505 = vpop.f32.mrb[0].mxu0
    %2506 = vdwg.mxu0
    %2507 = vmatprep.subr.bf16.mxu0 0
    %2508 = vmatpush1.bf16.msra.mxu0 %v2179
    %2509 = vmatprep.subr.bf16.mxu0 0
    %2510 = vmatpush1.bf16.msra.mxu0 %v2180
    %2511 = vmatprep.subr.bf16.mxu0 0
    %2512 = vmatpush1.bf16.msra.mxu0 %v2181
    %2513 = vmatprep.subr.bf16.mxu0 0
    %2514 = vmatpush1.bf16.msra.mxu0 %v2182
    %2515 = vmatprep.subr.bf16.mxu0 0
    %2516 = vmatpush1.bf16.msra.mxu0 %v2183
    %2517 = vmatprep.subr.bf16.mxu0 0
    %2518 = vmatpush1.bf16.msra.mxu0 %v2184
    %2519 = vmatprep.subr.bf16.mxu0 0
    %2520 = vmatpush1.bf16.msra.mxu0 %v2185
    %2521 = vmatprep.subr.bf16.mxu0 0
    %2522 = vmatpush1.bf16.msra.mxu0 %v2186
    %2523 = vmatprep.subr.bf16.mxu0 0
    %2524 = vmatpush1.bf16.msra.mxu0 %v2187
    %2525 = vmatprep.subr.bf16.mxu0 0
    %2526 = vmatpush1.bf16.msra.mxu0 %v2188
    %2527 = vmatprep.subr.bf16.mxu0 0
    %2528 = vmatpush1.bf16.msra.mxu0 %v2189
    %2529 = vmatprep.subr.bf16.mxu0 0
    %2530 = vmatpush1.bf16.msra.mxu0 %v2190
    %2531 = vmatprep.subr.bf16.mxu0 0
    %2532 = vmatpush1.bf16.msra.mxu0 %v2191
    %2533 = vmatprep.subr.bf16.mxu0 0
    %2534 = vmatpush1.bf16.msra.mxu0 %v2192
    %2535 = vmatprep.subr.bf16.mxu0 0
    %2536 = vmatpush1.bf16.msra.mxu0 %v2193
    %2537 = vmatprep.subr.bf16.mxu0 0
    %2538 = vmatpush1.bf16.msra.mxu0 %v2194
    %2539 = vmatprep.mubr.bf16.mxu0 %v1347
    %2540 = vmatmul.mubr.bf16.gmra.mrb[0].mxu0 %v1346
    %v2541 = vpop.f32.mrb[0].mxu0
    %v2542 = vadd.f32 %v2502, %v2541
    %v2543 = vpop.f32.mrb[0].mxu0
    %v2544 = vpop.f32.mrb[0].mxu0
    %v2545 = vpop.f32.mrb[0].mxu0
    %2546 = vdwg.mxu0
    %2547 = vmatprep.subr.bf16.mxu0 0
    %2548 = vmatpush1.bf16.msra.mxu0 %v2195
    %2549 = vmatprep.subr.bf16.mxu0 0
    %2550 = vmatpush1.bf16.msra.mxu0 %v2196
    %2551 = vmatprep.subr.bf16.mxu0 0
    %2552 = vmatpush1.bf16.msra.mxu0 %v2197
    %2553 = vmatprep.subr.bf16.mxu0 0
    %2554 = vmatpush1.bf16.msra.mxu0 %v2198
    %2555 = vmatprep.subr.bf16.mxu0 0
    %2556 = vmatpush1.bf16.msra.mxu0 %v2199
    %2557 = vmatprep.subr.bf16.mxu0 0
    %2558 = vmatpush1.bf16.msra.mxu0 %v2200
    %2559 = vmatprep.subr.bf16.mxu0 0
    %2560 = vmatpush1.bf16.msra.mxu0 %v2201
    %2561 = vmatprep.subr.bf16.mxu0 0
    %2562 = vmatpush1.bf16.msra.mxu0 %v2202
    %2563 = vmatprep.subr.bf16.mxu0 0
    %2564 = vmatpush1.bf16.msra.mxu0 %v2203
    %2565 = vmatprep.subr.bf16.mxu0 0
    %2566 = vmatpush1.bf16.msra.mxu0 %v2204
    %2567 = vmatprep.subr.bf16.mxu0 0
    %2568 = vmatpush1.bf16.msra.mxu0 %v2205
    %2569 = vmatprep.subr.bf16.mxu0 0
    %2570 = vmatpush1.bf16.msra.mxu0 %v2206
    %2571 = vmatprep.subr.bf16.mxu0 0
    %2572 = vmatpush1.bf16.msra.mxu0 %v2207
    %2573 = vmatprep.subr.bf16.mxu0 0
    %2574 = vmatpush1.bf16.msra.mxu0 %v2208
    %2575 = vmatprep.subr.bf16.mxu0 0
    %2576 = vmatpush1.bf16.msra.mxu0 %v2209
    %2577 = vmatprep.subr.bf16.mxu0 0
    %2578 = vmatpush1.bf16.msra.mxu0 %v2210
    %2579 = vmatprep.mubr.bf16.mxu0 %v1349
    %2580 = vmatmul.mubr.bf16.gmra.mrb[0].mxu0 %v1348
    %v2581 = vpop.f32.mrb[0].mxu0
    %v2582 = vadd.f32 %v2542, %v2581
    %v2583 = vpop.f32.mrb[0].mxu0
    %v2584 = vpop.f32.mrb[0].mxu0
    %v2585 = vpop.f32.mrb[0].mxu0
    %2586 = vdwg.mxu0
    %2587 = vmatprep.subr.bf16.mxu0 0
    %2588 = vmatpush1.bf16.msra.mxu0 %v2211
    %2589 = vmatprep.subr.bf16.mxu0 0
    %2590 = vmatpush1.bf16.msra.mxu0 %v2212
    %2591 = vmatprep.subr.bf16.mxu0 0
    %2592 = vmatpush1.bf16.msra.mxu0 %v2213
    %2593 = vmatprep.subr.bf16.mxu0 0
    %2594 = vmatpush1.bf16.msra.mxu0 %v2214
    %2595 = vmatprep.subr.bf16.mxu0 0
    %2596 = vmatpush1.bf16.msra.mxu0 %v2215
    %2597 = vmatprep.subr.bf16.mxu0 0
    %2598 = vmatpush1.bf16.msra.mxu0 %v2216
    %2599 = vmatprep.subr.bf16.mxu0 0
    %2600 = vmatpush1.bf16.msra.mxu0 %v2217
    %2601 = vmatprep.subr.bf16.mxu0 0
    %2602 = vmatpush1.bf16.msra.mxu0 %v2218
    %2603 = vmatprep.subr.bf16.mxu0 0
    %2604 = vmatpush1.bf16.msra.mxu0 %v2219
    %2605 = vmatprep.subr.bf16.mxu0 0
    %2606 = vmatpush1.bf16.msra.mxu0 %v2220
    %2607 = vmatprep.subr.bf16.mxu0 0
    %2608 = vmatpush1.bf16.msra.mxu0 %v2221
    %2609 = vmatprep.subr.bf16.mxu0 0
    %2610 = vmatpush1.bf16.msra.mxu0 %v2222
    %2611 = vmatprep.subr.bf16.mxu0 0
    %2612 = vmatpush1.bf16.msra.mxu0 %v2223
    %2613 = vmatprep.subr.bf16.mxu0 0
    %2614 = vmatpush1.bf16.msra.mxu0 %v2224
    %2615 = vmatprep.subr.bf16.mxu0 0
    %2616 = vmatpush1.bf16.msra.mxu0 %v2225
    %2617 = vmatprep.subr.bf16.mxu0 0
    %2618 = vmatpush1.bf16.msra.mxu0 %v2226
    %2619 = vmatprep.mubr.bf16.mxu0 %v1351
    %2620 = vmatmul.mubr.bf16.gmra.mrb[0].mxu0 %v1350
    %v2621 = vpop.f32.mrb[0].mxu0
    %v2622 = vadd.f32 %v2582, %v2621
    %v2623 = vpop.f32.mrb[0].mxu0
    %v2624 = vpop.f32.mrb[0].mxu0
    %v2625 = vpop.f32.mrb[0].mxu0
    %2626 = vdwg.mxu0
    %2627 = vmatprep.subr.bf16.mxu0 0
    %2628 = vmatpush1.bf16.msra.mxu0 %v2227
    %2629 = vmatprep.subr.bf16.mxu0 0
    %2630 = vmatpush1.bf16.msra.mxu0 %v2228
    %2631 = vmatprep.subr.bf16.mxu0 0
    %2632 = vmatpush1.bf16.msra.mxu0 %v2229
    %2633 = vmatprep.subr.bf16.mxu0 0
    %2634 = vmatpush1.bf16.msra.mxu0 %v2230
    %2635 = vmatprep.subr.bf16.mxu0 0
    %2636 = vmatpush1.bf16.msra.mxu0 %v2231
    %2637 = vmatprep.subr.bf16.mxu0 0
    %2638 = vmatpush1.bf16.msra.mxu0 %v2232
    %2639 = vmatprep.subr.bf16.mxu0 0
    %2640 = vmatpush1.bf16.msra.mxu0 %v2233
    %2641 = vmatprep.subr.bf16.mxu0 0
    %2642 = vmatpush1.bf16.msra.mxu0 %v2234
    %2643 = vmatprep.subr.bf16.mxu0 0
    %2644 = vmatpush1.bf16.msra.mxu0 %v2235
    %2645 = vmatprep.subr.bf16.mxu0 0
    %2646 = vmatpush1.bf16.msra.mxu0 %v2236
    %2647 = vmatprep.subr.bf16.mxu0 0
    %2648 = vmatpush1.bf16.msra.mxu0 %v2237
    %2649 = vmatprep.subr.bf16.mxu0 0
    %2650 = vmatpush1.bf16.msra.mxu0 %v2238
    %2651 = vmatprep.subr.bf16.mxu0 0
    %2652 = vmatpush1.bf16.msra.mxu0 %v2239
    %2653 = vmatprep.subr.bf16.mxu0 0
    %2654 = vmatpush1.bf16.msra.mxu0 %v2240
    %2655 = vmatprep.subr.bf16.mxu0 0
    %2656 = vmatpush1.bf16.msra.mxu0 %v2241
    %2657 = vmatprep.subr.bf16.mxu0 0
    %2658 = vmatpush1.bf16.msra.mxu0 %v2242
    %2659 = vmatprep.mubr.bf16.mxu0 %v1353
    %2660 = vmatmul.mubr.bf16.gmra.mrb[0].mxu0 %v1352
    %v2661 = vpop.f32.mrb[0].mxu0
    %v2662 = vadd.f32 %v2622, %v2661
    %v2663 = vpop.f32.mrb[0].mxu0
    %v2664 = vpop.f32.mrb[0].mxu0
    %v2665 = vpop.f32.mrb[0].mxu0
    %2666 = vdwg.mxu0
    %2667 = vmatprep.subr.bf16.mxu0 0
    %2668 = vmatpush1.bf16.msra.mxu0 %v2243
    %2669 = vmatprep.subr.bf16.mxu0 0
    %2670 = vmatpush1.bf16.msra.mxu0 %v2244
    %2671 = vmatprep.subr.bf16.mxu0 0
    %2672 = vmatpush1.bf16.msra.mxu0 %v2245
    %2673 = vmatprep.subr.bf16.mxu0 0
    %2674 = vmatpush1.bf16.msra.mxu0 %v2246
    %2675 = vmatprep.subr.bf16.mxu0 0
    %2676 = vmatpush1.bf16.msra.mxu0 %v2247
    %2677 = vmatprep.subr.bf16.mxu0 0
    %2678 = vmatpush1.bf16.msra.mxu0 %v2248
    %2679 = vmatprep.subr.bf16.mxu0 0
    %2680 = vmatpush1.bf16.msra.mxu0 %v2249
    %2681 = vmatprep.subr.bf16.mxu0 0
    %2682 = vmatpush1.bf16.msra.mxu0 %v2250
    %2683 = vmatprep.subr.bf16.mxu0 0
    %2684 = vmatpush1.bf16.msra.mxu0 %v2251
    %2685 = vmatprep.subr.bf16.mxu0 0
    %2686 = vmatpush1.bf16.msra.mxu0 %v2252
    %2687 = vmatprep.subr.bf16.mxu0 0
    %2688 = vmatpush1.bf16.msra.mxu0 %v2253
    %2689 = vmatprep.subr.bf16.mxu0 0
    %2690 = vmatpush1.bf16.msra.mxu0 %v2254
    %2691 = vmatprep.subr.bf16.mxu0 0
    %2692 = vmatpush1.bf16.msra.mxu0 %v2255
    %2693 = vmatprep.subr.bf16.mxu0 0
    %2694 = vmatpush1.bf16.msra.mxu0 %v2256
    %2695 = vmatprep.subr.bf16.mxu0 0
    %2696 = vmatpush1.bf16.msra.mxu0 %v2257
    %2697 = vmatprep.subr.bf16.mxu0 0
    %2698 = vmatpush1.bf16.msra.mxu0 %v2258
    %2699 = vmatprep.mubr.bf16.mxu0 %v1355
    %2700 = vmatmul.mubr.bf16.gmra.mrb[0].mxu0 %v1354
    %v2701 = vpop.f32.mrb[0].mxu0
    %v2702 = vadd.f32 %v2662, %v2701
    %v2703 = vpop.f32.mrb[0].mxu0
    %v2704 = vpop.f32.mrb[0].mxu0
    %v2705 = vpop.f32.mrb[0].mxu0
    %2706 = vdwg.mxu0
    %v2707 = vadd.f32 %v715, %v2702
    %v2708 = vsel %vm685, %v2707, 0.0
    %2709 = vadd.xlane.f32.xlu0 %v2708
    %v2710 = vpop.xlane.xlu0 %2709
    %v2711 = vmul.f32 %v2710, %v689
    %v2712 = vsub.f32 %v2707, %v2711
    %v2713 = vmul.f32 %v2712, %v2712
    %v2714 = vsel %vm685, %v2713, 0.0
    %2715 = vadd.xlane.f32.xlu0 %v2714
    %v2716 = vpop.xlane.xlu0 %2715
    %v2717 = vmul.f32 %v2716, %v689
    %v2718 = vadd.f32 %v2717, 1e-05
    %v2719 = vrsqrt.pop %v2718
    %v2720 = vmul.f32 %v2712, %v2719
    %v2721 = vld [vmem:[%s18] sm:$0x1]
    %v2723 = vlaneseq
    %v2724 = vshrl.u32 %v2723, 7
    %v2725 = vsub.s32 0, %v2724
    %v2726 = vrot.slane %v2721, %v2725
    %v2728 = vmul.f32 %v2720, %v2726
    %v2729 = vld [vmem:[%s19] sm:$0x1]
    %v2731 = vlaneseq
    %v2732 = vshrl.u32 %v2731, 7
    %v2733 = vsub.s32 0, %v2732
    %v2734 = vrot.slane %v2729, %v2733
    %v2736 = vadd.f32 %v2728, %v2734
    %v2737 = vld [vmem:[%s20] sm:$0xff]
    %v2738 = vld [vmem:[%s20 + $0x8] sm:$0xff]
    %v2739 = vld [vmem:[%s20 + $0x10] sm:$0xff]
    %v2740 = vld [vmem:[%s20 + $0x18] sm:$0xff]
    %v2741 = vld [vmem:[%s21] sm:$0x1]
    %v2743 = vlaneseq
    %v2744 = vshrl.u32 %v2743, 7
    %v2745 = vsub.s32 0, %v2744
    %v2746 = vrot.slane %v2741, %v2745
    %v2749 = vsel %vm462, %v2736, 0
    %2751 = vmatprep.subr.mxu0 0.0
    %2752 = vmatpush1.msra.mxu0 %v2737
    %2753 = vmatprep.subr.mxu0 0.0
    %2754 = vmatpush1.msra.mxu0 %v2738
    %2755 = vmatprep.subr.mxu0 0.0
    %2756 = vmatpush1.msra.mxu0 %v2739
    %2757 = vmatprep.subr.mxu0 0.0
    %2758 = vmatpush1.msra.mxu0 %v2740
    %2759 = vmatprep.subr.mxu0 0.0
    %2760 = vmatpush1.msra.mxu0 0.0
    %2761 = vmatprep.subr.mxu0 0.0
    %2762 = vmatpush1.msra.mxu0 0.0
    %2763 = vmatprep.subr.mxu0 0.0
    %2764 = vmatpush1.msra.mxu0 0.0
    %2765 = vmatprep.subr.mxu0 0.0
    %2766 = vmatpush1.msra.mxu0 0.0
    %2767 = vmatprep.subr.mxu0 0.0
    %2768 = vmatpush1.msra.mxu0 0.0
    %2769 = vmatprep.subr.mxu0 0.0
    %2770 = vmatpush1.msra.mxu0 0.0
    %2771 = vmatprep.subr.mxu0 0.0
    %2772 = vmatpush1.msra.mxu0 0.0
    %2773 = vmatprep.subr.mxu0 0.0
    %2774 = vmatpush1.msra.mxu0 0.0
    %2775 = vmatprep.subr.mxu0 0.0
    %2776 = vmatpush1.msra.mxu0 0.0
    %2777 = vmatprep.subr.mxu0 0.0
    %2778 = vmatpush1.msra.mxu0 0.0
    %2779 = vmatprep.subr.mxu0 0.0
    %2780 = vmatpush1.msra.mxu0 0.0
    %2781 = vmatprep.subr.mxu0 0.0
    %2782 = vmatpush1.msra.mxu0 0.0
    %2783 = vmatprep.subr.mxu0 0.0
    %2784 = vmatpush1.msra.mxu0 0.0
    %2785 = vmatprep.subr.mxu0 0.0
    %2786 = vmatpush1.msra.mxu0 0.0
    %2787 = vmatprep.subr.mxu0 0.0
    %2788 = vmatpush1.msra.mxu0 0.0
    %2789 = vmatprep.subr.mxu0 0.0
    %2790 = vmatpush1.msra.mxu0 0.0
    %2791 = vmatprep.subr.mxu0 0.0
    %2792 = vmatpush1.msra.mxu0 0.0
    %2793 = vmatprep.subr.mxu0 0.0
    %2794 = vmatpush1.msra.mxu0 0.0
    %2795 = vmatprep.subr.mxu0 0.0
    %2796 = vmatpush1.msra.mxu0 0.0
    %2797 = vmatprep.subr.mxu0 0.0
    %2798 = vmatpush1.msra.mxu0 0.0
    %2799 = vmatprep.subr.mxu0 0.0
    %2800 = vmatpush1.msra.mxu0 0.0
    %2801 = vmatprep.subr.mxu0 0.0
    %2802 = vmatpush1.msra.mxu0 0.0
    %2803 = vmatprep.subr.mxu0 0.0
    %2804 = vmatpush1.msra.mxu0 0.0
    %2805 = vmatprep.subr.mxu0 0.0
    %2806 = vmatpush1.msra.mxu0 0.0
    %2807 = vmatprep.subr.mxu0 0.0
    %2808 = vmatpush1.msra.mxu0 0.0
    %2809 = vmatprep.subr.mxu0 0.0
    %2810 = vmatpush1.msra.mxu0 0.0
    %2811 = vmatprep.subr.mxu0 0.0
    %2812 = vmatpush1.msra.mxu0 0.0
    %2813 = vmatprep.subr.mxu0 0.0
    %2814 = vmatpush1.msra.mxu0 0.0
    %2815 = vmatprep.mubr.f32.mxu0 0.0
    %2816 = vmatmul.mubr.f32.gmra.mrb[0].mxu0 %v2749
    %v2817 = vpop.f32.mrb[0].mxu0
    %v2818 = vadd.f32 %v2746, %v2817
    %v2819 = vpop.f32.mrb[0].mxu0
    %2820 = vdwg.mxu0
    %vm2821 = vcmask 17408
    %2822 = vst.msk [vmem:[#allocation2] sm:$0x3] %vm2821, %v2818
    // Predicated region
    $region90: #{tpu_custom_call.1} parent=1 // pred_check
      _
    $region91: #{tpu_custom_call.1} parent=1 // pred_check_branch
      %2824 = sbr.rel (0) target = $region93
    $region92: #{tpu_custom_call.1} parent=1 // pred_region
      %s2826 = ssub.s32 32, 32
      %2827 = vsyncadd [#allocation3], %s2826
      %s2829 = sshll.u32 [#allocation2], 4
      %s2830 = int_to_ptr.vmem [resolvable:$true] %s2829
      %2832 = dma.vmem_to_hbm [thread:$0]  %s2830, 32, %s22, [#allocation3]
    $region93: #{tpu_custom_call.1} parent=1 // pred_fallthru
      _
    // Predicated region
    $region94: #{tpu_custom_call.1} parent=1 // pred_check
      _
    $region95: #{tpu_custom_call.1} parent=1 // pred_check_branch
      %2834 = sbr.rel (0) target = $region97
    $region96: #{tpu_custom_call.1} parent=1 // pred_region
      %2835 = dma.done [#allocation3], 32
    $region97: #{tpu_custom_call.1} parent=1 // pred_fallthru
      _
    %2836 = vsyncpa [#allocation3], 1

</llo_original>
